<compile_context>
chip_gen: v6e
topology: v6e:2x2x1
jax: 0.10.0
libtpu: 0.0.40
codegen_flags: <defaults>
</compile_context>

<pallas_src>
import functools
import math

import jax
import jax.numpy as jnp
import numpy as np
from jax.experimental import pallas as pl
from jax.experimental.pallas import tpu as pltpu


def _rup(x, m):
    return ((x + m - 1) // m) * m


def _pad_to(a, shape):
    return jnp.pad(a, [(0, s - d) for s, d in zip(shape, a.shape)])


def mha_kernel(idx_ref, q_ref, wqT_ref, bq_ref, kh_ref, vh_ref, wfcT_ref,
               bfc_ref, gamma_ref, beta_ref, rmean_ref, rvar_ref, out_ref,
               *, d_k):
    """One query tile: full-width Q projection, per-head masked (grouped) softmax
    attention, single full-width fc projection, residual + eval-mode BatchNorm1d."""
    n_head, nk_p, dk_p = kh_ref.shape
    dv_p = vh_ref.shape[2]
    block_q = q_ref.shape[0]
    t = pl.program_id(0)

    q = q_ref[...]                                               # (block_q, dp) f32; also the residual

    # Full-width Q projection once per tile (all heads at once, pre-transposed weights).
    q_all = jnp.dot(q, wqT_ref[...],
                    preferred_element_type=jnp.float32) + bq_ref[...]    # (block_q, n_head*dk_p)

    # Group mask (key j belongs to query i), built once per tile and shared by all heads.
    # Additive finite bias (0 / -1e30): no NaNs, no per-head iota/compare/selects.
    row_ids = jax.lax.broadcasted_iota(jnp.int32, (block_q, nk_p), 0) + t * block_q
    mask_f = (row_ids == idx_ref[...]).astype(jnp.float32)       # (block_q, nk_p)
    bias = (mask_f - 1.0) * 1e30                                 # 0 if key in group else -1e30
    has_key = jnp.max(mask_f, axis=-1, keepdims=True)            # (block_q, 1); 0.0 for empty groups

    scale = 1.0 / math.sqrt(d_k)
    head_outs = []
    for h in range(n_head):                                      # statically unrolled; n_head is small
        # Fold 1/sqrt(d_k) into Qh (cheaper than scaling the (block_q, nk_p) logits).
        qh = (q_all[:, h * dk_p:(h + 1) * dk_p] * scale).astype(jnp.bfloat16)   # (block_q, dk_p)
        kh = kh_ref[h]                                                           # (nk_p, dk_p)  bf16
        vh = vh_ref[h]                                                           # (nk_p, dv_p)  bf16
        # S = Qh . Kh^T  -- contract last axes of both (no in-kernel transpose), bf16 in / f32 acc.
        s = jax.lax.dot_general(qh, kh, (((1,), (1,)), ((), ())),
                                preferred_element_type=jnp.float32) + bias
        row_max = jnp.max(s, axis=-1, keepdims=True)
        p = jnp.exp(s - row_max)                                 # masked keys underflow to exactly 0
        denom = jnp.sum(p, axis=-1, keepdims=True)               # >= 1 (never 0), no guard needed
        attn = (p * pl.reciprocal(denom, approx=True)).astype(jnp.bfloat16)
        head_outs.append(jnp.dot(attn, vh, preferred_element_type=jnp.float32))   # (block_q, dv_p) f32

    # Heads concatenated on 128-aligned lane slots; queries with no keys -> 0 (scatter semantics).
    o_all = jnp.concatenate(head_outs, axis=-1) * has_key        # (block_q, n_head*dv_p)

    # Single full-width fc projection + bias + residual + BatchNorm1d (eval mode, eps=1e-3).
    y = jnp.dot(o_all, wfcT_ref[...], preferred_element_type=jnp.float32) + bfc_ref[...]
    y = y + q                                                    # residual (dropout = identity in eval)
    y = (y - rmean_ref[...]) * jax.lax.rsqrt(rvar_ref[...] + 1e-3)
    y = y * gamma_ref[...] + beta_ref[...]
    out_ref[...] = y.astype(out_ref.dtype)


def multi_head_attention_pallas(q, k, v, indices_q2k, params):
    n_head, d_k, d_v = params["n_head"], params["d_k"], params["d_v"]
    N_q, d_model = q.shape
    N_k = k.shape[0]

    # Lane-dense padded sizes (multiples of 128) and N_q tiling (multiples of 8, <=128).
    dp = _rup(d_model, 128)
    dk_p = _rup(d_k, 128)
    dv_p = _rup(d_v, 128)
    nk_p = _rup(N_k, 128)
    block_q = min(128, _rup(N_q, 8))
    nq_p = _rup(N_q, block_q)
    n_tiles = nq_p // block_q

    # ---- one-time plain-JAX layout prep (padding + pre-transposition) ----
    # Q projection weight pre-transposed to (dp, n_head*dk_p): kernel does q @ wqT, no `.T`.
    wq3 = _pad_to(params["wq"].reshape(n_head, d_k, d_model), (n_head, dk_p, dp))
    wqT = wq3.transpose(2, 0, 1).reshape(dp, n_head * dk_p)
    bq = _pad_to(params["bq"].reshape(n_head, d_k), (n_head, dk_p)).reshape(1, n_head * dk_p)

    # K/V projections hoisted out of the kernel (query-independent, one full-width matmul each),
    # split per head, zero-padded to 128 lanes, cast to bf16 for the MXU.
    k_all = (k @ params["wk"].T + params["bk"]).reshape(N_k, n_head, d_k).transpose(1, 0, 2)
    v_all = (v @ params["wv"].T + params["bv"]).reshape(N_k, n_head, d_v).transpose(1, 0, 2)
    k_all = _pad_to(k_all, (n_head, nk_p, dk_p)).astype(jnp.bfloat16)
    v_all = _pad_to(v_all, (n_head, nk_p, dv_p)).astype(jnp.bfloat16)

    # fc weight pre-transposed to (n_head*dv_p, dp); padded d_v rows are zero.
    wfc3 = _pad_to(params["wfc"].T.reshape(n_head, d_v, d_model), (n_head, dv_p, dp))
    wfcT = wfc3.reshape(n_head * dv_p, dp)

    bfc = _pad_to(params["bfc"].reshape(1, d_model), (1, dp))
    gamma = _pad_to(params["gamma"].reshape(1, d_model), (1, dp))
    beta = _pad_to(params["beta"].reshape(1, d_model), (1, dp))
    rmean = _pad_to(params["rmean"].reshape(1, d_model), (1, dp))
    rvar = jnp.pad(params["rvar"].reshape(1, d_model), ((0, 0), (0, dp - d_model)),
                   constant_values=1.0)

    qp = _pad_to(q, (nq_p, dp))
    idx2d = jnp.pad(indices_q2k.astype(jnp.int32), (0, nk_p - N_k),
                    constant_values=-1).reshape(1, nk_p)           # padded keys never match a query

    kernel = functools.partial(mha_kernel, d_k=d_k)

    const2 = lambda t: (0, 0)
    in_specs = [
        pl.BlockSpec((1, nk_p), const2),                          # indices_q2k (padded with -1)
        pl.BlockSpec((block_q, dp), lambda t: (t, 0)),            # q tile (doubles as residual)
        pl.BlockSpec((dp, n_head * dk_p), const2),                # WqT
        pl.BlockSpec((1, n_head * dk_p), const2),                 # bq
        pl.BlockSpec((n_head, nk_p, dk_p), lambda t: (0, 0, 0)),  # K heads (bf16)
        pl.BlockSpec((n_head, nk_p, dv_p), lambda t: (0, 0, 0)),  # V heads (bf16)
        pl.BlockSpec((n_head * dv_p, dp), const2),                # WfcT
        pl.BlockSpec((1, dp), const2),                            # bfc
        pl.BlockSpec((1, dp), const2),                            # bn gamma
        pl.BlockSpec((1, dp), const2),                            # bn beta
        pl.BlockSpec((1, dp), const2),                            # bn running mean
        pl.BlockSpec((1, dp), const2),                            # bn running var
    ]

    out = pl.pallas_call(
        kernel,
        out_shape=jax.ShapeDtypeStruct((nq_p, dp), jnp.float32),
        grid_spec=pltpu.PrefetchScalarGridSpec(
            num_scalar_prefetch=0,
            grid=(n_tiles,),
            in_specs=in_specs,
            out_specs=pl.BlockSpec((block_q, dp), lambda t: (t, 0)),
        ),
        compiler_params=pltpu.CompilerParams(
            dimension_semantics=("parallel",),        # query tiles are independent -> megacore-friendly
            vmem_limit_bytes=64 * 1024 * 1024,
        ),
    )(idx2d, qp, wqT, bq, k_all, v_all, wfcT, bfc, gamma, beta, rmean, rvar)

    return out[:N_q, :d_model]


def reference_forward(qx, kx, vx, idx, params):
    """Pure-JAX re-implementation of the PyTorch scatter-based forward (eval mode)."""
    n_head, d_k, d_v = params["n_head"], params["d_k"], params["d_v"]
    N_q = qx.shape[0]
    Q = qx @ params["wq"].T + params["bq"]
    K = kx @ params["wk"].T + params["bk"]
    V = vx @ params["wv"].T + params["bv"]
    Qh = Q.reshape(N_q, n_head, d_k).transpose(1, 0, 2)       # (head, N_q, d_k)
    Kh = K.reshape(-1, n_head, d_k).transpose(1, 0, 2)        # (head, N_k, d_k)
    Vh = V.reshape(-1, n_head, d_v).transpose(1, 0, 2)        # (head, N_k, d_v)

    q_for_k = Qh[:, idx]                                      # (head, N_k, d_k)
    logits = (q_for_k * Kh).sum(-1) / jnp.sqrt(jnp.float32(d_k))     # (head, N_k)
    lmax = jax.ops.segment_max(logits.T, idx, num_segments=N_q).T    # (head, N_q)
    logits = logits - lmax[:, idx]
    e = jnp.exp(logits)
    se = jax.ops.segment_sum(e.T, idx, num_segments=N_q).T           # (head, N_q)
    attn = e / se[:, idx]
    weighted = attn[..., None] * Vh                                   # (head, N_k, d_v)
    outh = jax.ops.segment_sum(weighted.transpose(1, 0, 2), idx,
                               num_segments=N_q)                      # (N_q, head, d_v)
    out_flat = outh.reshape(N_q, n_head * d_v)
    y = out_flat @ params["wfc"].T + params["bfc"]
    y = y + qx
    y = (y - params["rmean"]) / jnp.sqrt(params["rvar"] + 1e-3)
    y = y * params["gamma"] + params["beta"]
    return y


def init_params(key, n_head, d_model):
    d_k = d_model // n_head
    d_v = d_model // n_head
    ks = jax.random.split(key, 8)
    std_qk = math.sqrt(2.0 / (d_model + d_k))
    std_v = math.sqrt(2.0 / (d_model + d_v))
    std_fc = math.sqrt(2.0 / (n_head * d_v + d_model))          # xavier_normal
    b_in = 1.0 / math.sqrt(d_model)                              # nn.Linear default bias bound
    b_fc = 1.0 / math.sqrt(n_head * d_v)
    params = dict(
        n_head=n_head, d_k=d_k, d_v=d_v,
        wq=std_qk * jax.random.normal(ks[0], (n_head * d_k, d_model), jnp.float32),
        wk=std_qk * jax.random.normal(ks[1], (n_head * d_k, d_model), jnp.float32),
        wv=std_v * jax.random.normal(ks[2], (n_head * d_v, d_model), jnp.float32),
        bq=jax.random.uniform(ks[3], (n_head * d_k,), jnp.float32, -b_in, b_in),
        bk=jax.random.uniform(ks[4], (n_head * d_k,), jnp.float32, -b_in, b_in),
        bv=jax.random.uniform(ks[5], (n_head * d_v,), jnp.float32, -b_in, b_in),
        wfc=std_fc * jax.random.normal(ks[6], (d_model, n_head * d_v), jnp.float32),
        bfc=jax.random.uniform(ks[7], (d_model,), jnp.float32, -b_fc, b_fc),
        gamma=jnp.ones((d_model,), jnp.float32),
        beta=jnp.zeros((d_model,), jnp.float32),
        rmean=jnp.zeros((d_model,), jnp.float32),
        rvar=jnp.ones((d_model,), jnp.float32),
    )
    return params


if __name__ == "__main__":
    n_head, d_model = 4, 32
    N_q, N_k = 8, 16

    key = jax.random.PRNGKey(0)
    kp, kq, kk, kv, ki = jax.random.split(key, 5)
    params = init_params(kp, n_head, d_model)

    q = jax.random.normal(kq, (N_q, d_model), jnp.float32)
    k = jax.random.normal(kk, (N_k, d_model), jnp.float32)
    v = jax.random.normal(kv, (N_k, d_model), jnp.float32)
    indices_q2k = jax.random.randint(ki, (N_k,), 0, N_q).astype(jnp.int32)

    out = multi_head_attention_pallas(q, k, v, indices_q2k, params)
    out = jax.block_until_ready(out)

    ref = jax.block_until_ready(reference_forward(q, k, v, indices_q2k, params))
    # Tolerance is bf16-limited by design: the attention matmuls (Q.K^T and attn.V) use
    # bf16 MXU operands with f32 accumulation; structural errors would be O(1), well
    # above this bound.
    np.testing.assert_allclose(np.asarray(out), np.asarray(ref), rtol=5e-2, atol=5e-2)

    print("KERNEL_OK")
</pallas_src>

<mosaic_0001>
module attributes {stable_mosaic.version = 11 : i64} {
  func.func @mha_kernel(%arg0: i32, %arg1: memref<1x128xi32, #tpu.memory_space<vmem>>, %arg2: memref<8x128xf32, #tpu.memory_space<vmem>>, %arg3: memref<128x512xf32, #tpu.memory_space<vmem>>, %arg4: memref<1x512xf32, #tpu.memory_space<vmem>>, %arg5: memref<4x128x128xbf16, #tpu.memory_space<vmem>>, %arg6: memref<4x128x128xbf16, #tpu.memory_space<vmem>>, %arg7: memref<512x128xf32, #tpu.memory_space<vmem>>, %arg8: memref<1x128xf32, #tpu.memory_space<vmem>>, %arg9: memref<1x128xf32, #tpu.memory_space<vmem>>, %arg10: memref<1x128xf32, #tpu.memory_space<vmem>>, %arg11: memref<1x128xf32, #tpu.memory_space<vmem>>, %arg12: memref<1x128xf32, #tpu.memory_space<vmem>>, %arg13: memref<8x128xf32, #tpu.memory_space<vmem>>) attributes {dimension_semantics = [#tpu.dimension_semantics<parallel>], iteration_bounds = array<i64: 1>, scalar_prefetch = 0 : i64, scratch_operands = 0 : i64, tpu.core_type = #tpu.core_type<tc>, window_params = [{pipeline_mode = #tpu.pipeline_mode<synchronous>, transform_indices = @transform_0, window_bounds = array<i64: 1, 128>}, {transform_indices = @transform_1, window_bounds = array<i64: 8, 128>}, {pipeline_mode = #tpu.pipeline_mode<synchronous>, transform_indices = @transform_2, window_bounds = array<i64: 128, 512>}, {pipeline_mode = #tpu.pipeline_mode<synchronous>, transform_indices = @transform_3, window_bounds = array<i64: 1, 512>}, {pipeline_mode = #tpu.pipeline_mode<synchronous>, transform_indices = @transform_4, window_bounds = array<i64: 4, 128, 128>}, {pipeline_mode = #tpu.pipeline_mode<synchronous>, transform_indices = @transform_5, window_bounds = array<i64: 4, 128, 128>}, {pipeline_mode = #tpu.pipeline_mode<synchronous>, transform_indices = @transform_6, window_bounds = array<i64: 512, 128>}, {pipeline_mode = #tpu.pipeline_mode<synchronous>, transform_indices = @transform_7, window_bounds = array<i64: 1, 128>}, {pipeline_mode = #tpu.pipeline_mode<synchronous>, transform_indices = @transform_8, window_bounds = array<i64: 1, 128>}, {pipeline_mode = #tpu.pipeline_mode<synchronous>, transform_indices = @transform_9, window_bounds = array<i64: 1, 128>}, {pipeline_mode = #tpu.pipeline_mode<synchronous>, transform_indices = @transform_10, window_bounds = array<i64: 1, 128>}, {pipeline_mode = #tpu.pipeline_mode<synchronous>, transform_indices = @transform_11, window_bounds = array<i64: 1, 128>}, {transform_indices = @transform_12, window_bounds = array<i64: 8, 128>}]} {
    %c0 = arith.constant 0 : index
    %c0_0 = arith.constant 0 : index
    %0 = vector.load %arg2[%c0, %c0_0] : memref<8x128xf32, #tpu.memory_space<vmem>>, vector<8x128xf32>
    %c0_1 = arith.constant 0 : index
    %c0_2 = arith.constant 0 : index
    %1 = vector.load %arg3[%c0_1, %c0_2] : memref<128x512xf32, #tpu.memory_space<vmem>>, vector<128x512xf32>
    %cst = arith.constant dense<0.000000e+00> : vector<8x512xf32>
    %2 = tpu.matmul %0, %1, %cst {dimension_numbers = #tpu.dot_dimension_numbers<[1], [0], [0], [1], [0, 0, 1, 1], [], []>} : vector<8x128xf32>, vector<128x512xf32>, vector<8x512xf32> -> vector<8x512xf32>
    %c0_3 = arith.constant 0 : index
    %c0_4 = arith.constant 0 : index
    %3 = vector.load %arg4[%c0_3, %c0_4] : memref<1x512xf32, #tpu.memory_space<vmem>>, vector<1x512xf32>
    %4 = vector.broadcast %3 : vector<1x512xf32> to vector<8x512xf32>
    %5 = arith.addf %2, %4 : vector<8x512xf32>
    %6 = tpu.iota {dimensions = array<i32: 0>} : vector<8x128xi32>
    %c8_i32 = arith.constant 8 : i32
    %7 = arith.muli %arg0, %c8_i32 : i32
    %8 = vector.broadcast %7 : i32 to vector<8x128xi32>
    %9 = arith.addi %6, %8 : vector<8x128xi32>
    %c0_5 = arith.constant 0 : index
    %c0_6 = arith.constant 0 : index
    %10 = vector.load %arg1[%c0_5, %c0_6] : memref<1x128xi32, #tpu.memory_space<vmem>>, vector<1x128xi32>
    %11 = vector.broadcast %10 : vector<1x128xi32> to vector<8x128xi32>
    %12 = arith.cmpi eq, %9, %11 : vector<8x128xi32>
    %13 = arith.extui %12 : vector<8x128xi1> to vector<8x128xi32>
    %14 = arith.sitofp %13 : vector<8x128xi32> to vector<8x128xf32>
    %cst_7 = arith.constant 1.000000e+00 : f32
    %15 = vector.broadcast %cst_7 : f32 to vector<8x128xf32>
    %16 = arith.subf %14, %15 : vector<8x128xf32>
    %cst_8 = arith.constant 1.000000e+30 : f32
    %17 = vector.broadcast %cst_8 : f32 to vector<8x128xf32>
    %18 = arith.mulf %16, %17 : vector<8x128xf32>
    %cst_9 = arith.constant dense<0xFF800000> : vector<8xf32>
    %19 = vector.multi_reduction <maximumf>, %14, %cst_9 [1] : vector<8x128xf32> to vector<8xf32>
    %20 = vector.shape_cast %19 : vector<8xf32> to vector<8x1xf32>
    %21 = vector.extract_strided_slice %5 {offsets = [0, 0], sizes = [8, 128], strides = [1, 1]} : vector<8x512xf32> to vector<8x128xf32>
    %cst_10 = arith.constant 0.353553385 : f32
    %22 = vector.broadcast %cst_10 : f32 to vector<8x128xf32>
    %23 = arith.mulf %21, %22 : vector<8x128xf32>
    %24 = arith.truncf %23 : vector<8x128xf32> to vector<8x128xbf16>
    %c0_11 = arith.constant 0 : index
    %c0_12 = arith.constant 0 : index
    %c0_13 = arith.constant 0 : index
    %25 = vector.load %arg5[%c0_11, %c0_12, %c0_13] : memref<4x128x128xbf16, #tpu.memory_space<vmem>>, vector<1x128x128xbf16>
    %26 = vector.shape_cast %25 : vector<1x128x128xbf16> to vector<128x128xbf16>
    %c0_14 = arith.constant 0 : index
    %c0_15 = arith.constant 0 : index
    %c0_16 = arith.constant 0 : index
    %27 = vector.load %arg6[%c0_14, %c0_15, %c0_16] : memref<4x128x128xbf16, #tpu.memory_space<vmem>>, vector<1x128x128xbf16>
    %28 = vector.shape_cast %27 : vector<1x128x128xbf16> to vector<128x128xbf16>
    %cst_17 = arith.constant dense<0.000000e+00> : vector<8x128xf32>
    %29 = tpu.matmul %24, %26, %cst_17 {dimension_numbers = #tpu.dot_dimension_numbers<[1], [1], [0], [0], [0, 0, 1, 0], [], []>} : vector<8x128xbf16>, vector<128x128xbf16>, vector<8x128xf32> -> vector<8x128xf32>
    %30 = arith.addf %29, %18 : vector<8x128xf32>
    %cst_18 = arith.constant dense<0xFF800000> : vector<8xf32>
    %31 = vector.multi_reduction <maximumf>, %30, %cst_18 [1] : vector<8x128xf32> to vector<8xf32>
    %32 = vector.shape_cast %31 : vector<8xf32> to vector<8x1xf32>
    %33 = vector.broadcast %32 : vector<8x1xf32> to vector<8x128xf32>
    %34 = arith.subf %30, %33 : vector<8x128xf32>
    %35 = math.exp %34 : vector<8x128xf32>
    %cst_19 = arith.constant dense<0.000000e+00> : vector<8xf32>
    %36 = vector.multi_reduction <add>, %35, %cst_19 [1] : vector<8x128xf32> to vector<8xf32>
    %37 = vector.shape_cast %36 : vector<8xf32> to vector<8x1xf32>
    %38 = tpu.reciprocal %37 {approx = true} : vector<8x1xf32> -> vector<8x1xf32>
    %39 = vector.broadcast %38 : vector<8x1xf32> to vector<8x128xf32>
    %40 = arith.mulf %35, %39 : vector<8x128xf32>
    %41 = arith.truncf %40 : vector<8x128xf32> to vector<8x128xbf16>
    %cst_20 = arith.constant dense<0.000000e+00> : vector<8x128xf32>
    %42 = tpu.matmul %41, %28, %cst_20 {dimension_numbers = #tpu.dot_dimension_numbers<[1], [0], [0], [1], [0, 0, 1, 1], [], []>} : vector<8x128xbf16>, vector<128x128xbf16>, vector<8x128xf32> -> vector<8x128xf32>
    %43 = vector.extract_strided_slice %5 {offsets = [0, 128], sizes = [8, 128], strides = [1, 1]} : vector<8x512xf32> to vector<8x128xf32>
    %cst_21 = arith.constant 0.353553385 : f32
    %44 = vector.broadcast %cst_21 : f32 to vector<8x128xf32>
    %45 = arith.mulf %43, %44 : vector<8x128xf32>
    %46 = arith.truncf %45 : vector<8x128xf32> to vector<8x128xbf16>
    %c1 = arith.constant 1 : index
    %c0_22 = arith.constant 0 : index
    %c0_23 = arith.constant 0 : index
    %47 = vector.load %arg5[%c1, %c0_22, %c0_23] : memref<4x128x128xbf16, #tpu.memory_space<vmem>>, vector<1x128x128xbf16>
    %48 = vector.shape_cast %47 : vector<1x128x128xbf16> to vector<128x128xbf16>
    %c1_24 = arith.constant 1 : index
    %c0_25 = arith.constant 0 : index
    %c0_26 = arith.constant 0 : index
    %49 = vector.load %arg6[%c1_24, %c0_25, %c0_26] : memref<4x128x128xbf16, #tpu.memory_space<vmem>>, vector<1x128x128xbf16>
    %50 = vector.shape_cast %49 : vector<1x128x128xbf16> to vector<128x128xbf16>
    %cst_27 = arith.constant dense<0.000000e+00> : vector<8x128xf32>
    %51 = tpu.matmul %46, %48, %cst_27 {dimension_numbers = #tpu.dot_dimension_numbers<[1], [1], [0], [0], [0, 0, 1, 0], [], []>} : vector<8x128xbf16>, vector<128x128xbf16>, vector<8x128xf32> -> vector<8x128xf32>
    %52 = arith.addf %51, %18 : vector<8x128xf32>
    %cst_28 = arith.constant dense<0xFF800000> : vector<8xf32>
    %53 = vector.multi_reduction <maximumf>, %52, %cst_28 [1] : vector<8x128xf32> to vector<8xf32>
    %54 = vector.shape_cast %53 : vector<8xf32> to vector<8x1xf32>
    %55 = vector.broadcast %54 : vector<8x1xf32> to vector<8x128xf32>
    %56 = arith.subf %52, %55 : vector<8x128xf32>
    %57 = math.exp %56 : vector<8x128xf32>
    %cst_29 = arith.constant dense<0.000000e+00> : vector<8xf32>
    %58 = vector.multi_reduction <add>, %57, %cst_29 [1] : vector<8x128xf32> to vector<8xf32>
    %59 = vector.shape_cast %58 : vector<8xf32> to vector<8x1xf32>
    %60 = tpu.reciprocal %59 {approx = true} : vector<8x1xf32> -> vector<8x1xf32>
    %61 = vector.broadcast %60 : vector<8x1xf32> to vector<8x128xf32>
    %62 = arith.mulf %57, %61 : vector<8x128xf32>
    %63 = arith.truncf %62 : vector<8x128xf32> to vector<8x128xbf16>
    %cst_30 = arith.constant dense<0.000000e+00> : vector<8x128xf32>
    %64 = tpu.matmul %63, %50, %cst_30 {dimension_numbers = #tpu.dot_dimension_numbers<[1], [0], [0], [1], [0, 0, 1, 1], [], []>} : vector<8x128xbf16>, vector<128x128xbf16>, vector<8x128xf32> -> vector<8x128xf32>
    %65 = vector.extract_strided_slice %5 {offsets = [0, 256], sizes = [8, 128], strides = [1, 1]} : vector<8x512xf32> to vector<8x128xf32>
    %cst_31 = arith.constant 0.353553385 : f32
    %66 = vector.broadcast %cst_31 : f32 to vector<8x128xf32>
    %67 = arith.mulf %65, %66 : vector<8x128xf32>
    %68 = arith.truncf %67 : vector<8x128xf32> to vector<8x128xbf16>
    %c2 = arith.constant 2 : index
    %c0_32 = arith.constant 0 : index
    %c0_33 = arith.constant 0 : index
    %69 = vector.load %arg5[%c2, %c0_32, %c0_33] : memref<4x128x128xbf16, #tpu.memory_space<vmem>>, vector<1x128x128xbf16>
    %70 = vector.shape_cast %69 : vector<1x128x128xbf16> to vector<128x128xbf16>
    %c2_34 = arith.constant 2 : index
    %c0_35 = arith.constant 0 : index
    %c0_36 = arith.constant 0 : index
    %71 = vector.load %arg6[%c2_34, %c0_35, %c0_36] : memref<4x128x128xbf16, #tpu.memory_space<vmem>>, vector<1x128x128xbf16>
    %72 = vector.shape_cast %71 : vector<1x128x128xbf16> to vector<128x128xbf16>
    %cst_37 = arith.constant dense<0.000000e+00> : vector<8x128xf32>
    %73 = tpu.matmul %68, %70, %cst_37 {dimension_numbers = #tpu.dot_dimension_numbers<[1], [1], [0], [0], [0, 0, 1, 0], [], []>} : vector<8x128xbf16>, vector<128x128xbf16>, vector<8x128xf32> -> vector<8x128xf32>
    %74 = arith.addf %73, %18 : vector<8x128xf32>
    %cst_38 = arith.constant dense<0xFF800000> : vector<8xf32>
    %75 = vector.multi_reduction <maximumf>, %74, %cst_38 [1] : vector<8x128xf32> to vector<8xf32>
    %76 = vector.shape_cast %75 : vector<8xf32> to vector<8x1xf32>
    %77 = vector.broadcast %76 : vector<8x1xf32> to vector<8x128xf32>
    %78 = arith.subf %74, %77 : vector<8x128xf32>
    %79 = math.exp %78 : vector<8x128xf32>
    %cst_39 = arith.constant dense<0.000000e+00> : vector<8xf32>
    %80 = vector.multi_reduction <add>, %79, %cst_39 [1] : vector<8x128xf32> to vector<8xf32>
    %81 = vector.shape_cast %80 : vector<8xf32> to vector<8x1xf32>
    %82 = tpu.reciprocal %81 {approx = true} : vector<8x1xf32> -> vector<8x1xf32>
    %83 = vector.broadcast %82 : vector<8x1xf32> to vector<8x128xf32>
    %84 = arith.mulf %79, %83 : vector<8x128xf32>
    %85 = arith.truncf %84 : vector<8x128xf32> to vector<8x128xbf16>
    %cst_40 = arith.constant dense<0.000000e+00> : vector<8x128xf32>
    %86 = tpu.matmul %85, %72, %cst_40 {dimension_numbers = #tpu.dot_dimension_numbers<[1], [0], [0], [1], [0, 0, 1, 1], [], []>} : vector<8x128xbf16>, vector<128x128xbf16>, vector<8x128xf32> -> vector<8x128xf32>
    %87 = vector.extract_strided_slice %5 {offsets = [0, 384], sizes = [8, 128], strides = [1, 1]} : vector<8x512xf32> to vector<8x128xf32>
    %cst_41 = arith.constant 0.353553385 : f32
    %88 = vector.broadcast %cst_41 : f32 to vector<8x128xf32>
    %89 = arith.mulf %87, %88 : vector<8x128xf32>
    %90 = arith.truncf %89 : vector<8x128xf32> to vector<8x128xbf16>
    %c3 = arith.constant 3 : index
    %c0_42 = arith.constant 0 : index
    %c0_43 = arith.constant 0 : index
    %91 = vector.load %arg5[%c3, %c0_42, %c0_43] : memref<4x128x128xbf16, #tpu.memory_space<vmem>>, vector<1x128x128xbf16>
    %92 = vector.shape_cast %91 : vector<1x128x128xbf16> to vector<128x128xbf16>
    %c3_44 = arith.constant 3 : index
    %c0_45 = arith.constant 0 : index
    %c0_46 = arith.constant 0 : index
    %93 = vector.load %arg6[%c3_44, %c0_45, %c0_46] : memref<4x128x128xbf16, #tpu.memory_space<vmem>>, vector<1x128x128xbf16>
    %94 = vector.shape_cast %93 : vector<1x128x128xbf16> to vector<128x128xbf16>
    %cst_47 = arith.constant dense<0.000000e+00> : vector<8x128xf32>
    %95 = tpu.matmul %90, %92, %cst_47 {dimension_numbers = #tpu.dot_dimension_numbers<[1], [1], [0], [0], [0, 0, 1, 0], [], []>} : vector<8x128xbf16>, vector<128x128xbf16>, vector<8x128xf32> -> vector<8x128xf32>
    %96 = arith.addf %95, %18 : vector<8x128xf32>
    %cst_48 = arith.constant dense<0xFF800000> : vector<8xf32>
    %97 = vector.multi_reduction <maximumf>, %96, %cst_48 [1] : vector<8x128xf32> to vector<8xf32>
    %98 = vector.shape_cast %97 : vector<8xf32> to vector<8x1xf32>
    %99 = vector.broadcast %98 : vector<8x1xf32> to vector<8x128xf32>
    %100 = arith.subf %96, %99 : vector<8x128xf32>
    %101 = math.exp %100 : vector<8x128xf32>
    %cst_49 = arith.constant dense<0.000000e+00> : vector<8xf32>
    %102 = vector.multi_reduction <add>, %101, %cst_49 [1] : vector<8x128xf32> to vector<8xf32>
    %103 = vector.shape_cast %102 : vector<8xf32> to vector<8x1xf32>
    %104 = tpu.reciprocal %103 {approx = true} : vector<8x1xf32> -> vector<8x1xf32>
    %105 = vector.broadcast %104 : vector<8x1xf32> to vector<8x128xf32>
    %106 = arith.mulf %101, %105 : vector<8x128xf32>
    %107 = arith.truncf %106 : vector<8x128xf32> to vector<8x128xbf16>
    %cst_50 = arith.constant dense<0.000000e+00> : vector<8x128xf32>
    %108 = tpu.matmul %107, %94, %cst_50 {dimension_numbers = #tpu.dot_dimension_numbers<[1], [0], [0], [1], [0, 0, 1, 1], [], []>} : vector<8x128xbf16>, vector<128x128xbf16>, vector<8x128xf32> -> vector<8x128xf32>
    %109 = tpu.concatenate %42, %64, %86, %108 in 1 : vector<8x128xf32>, vector<8x128xf32>, vector<8x128xf32>, vector<8x128xf32> -> vector<8x512xf32>
    %110 = vector.broadcast %20 : vector<8x1xf32> to vector<8x512xf32>
    %111 = arith.mulf %109, %110 : vector<8x512xf32>
    %c0_51 = arith.constant 0 : index
    %c0_52 = arith.constant 0 : index
    %112 = vector.load %arg7[%c0_51, %c0_52] : memref<512x128xf32, #tpu.memory_space<vmem>>, vector<512x128xf32>
    %cst_53 = arith.constant dense<0.000000e+00> : vector<8x128xf32>
    %113 = tpu.matmul %111, %112, %cst_53 {dimension_numbers = #tpu.dot_dimension_numbers<[1], [0], [0], [1], [0, 0, 1, 1], [], []>} : vector<8x512xf32>, vector<512x128xf32>, vector<8x128xf32> -> vector<8x128xf32>
    %c0_54 = arith.constant 0 : index
    %c0_55 = arith.constant 0 : index
    %114 = vector.load %arg8[%c0_54, %c0_55] : memref<1x128xf32, #tpu.memory_space<vmem>>, vector<1x128xf32>
    %115 = vector.broadcast %114 : vector<1x128xf32> to vector<8x128xf32>
    %116 = arith.addf %113, %115 : vector<8x128xf32>
    %117 = arith.addf %116, %0 : vector<8x128xf32>
    %c0_56 = arith.constant 0 : index
    %c0_57 = arith.constant 0 : index
    %118 = vector.load %arg11[%c0_56, %c0_57] : memref<1x128xf32, #tpu.memory_space<vmem>>, vector<1x128xf32>
    %119 = vector.broadcast %118 : vector<1x128xf32> to vector<8x128xf32>
    %120 = arith.subf %117, %119 : vector<8x128xf32>
    %c0_58 = arith.constant 0 : index
    %c0_59 = arith.constant 0 : index
    %121 = vector.load %arg12[%c0_58, %c0_59] : memref<1x128xf32, #tpu.memory_space<vmem>>, vector<1x128xf32>
    %cst_60 = arith.constant 1.000000e-03 : f32
    %122 = vector.broadcast %cst_60 : f32 to vector<1x128xf32>
    %123 = arith.addf %121, %122 : vector<1x128xf32>
    %124 = math.rsqrt %123 : vector<1x128xf32>
    %125 = vector.broadcast %124 : vector<1x128xf32> to vector<8x128xf32>
    %126 = arith.mulf %120, %125 : vector<8x128xf32>
    %c0_61 = arith.constant 0 : index
    %c0_62 = arith.constant 0 : index
    %127 = vector.load %arg9[%c0_61, %c0_62] : memref<1x128xf32, #tpu.memory_space<vmem>>, vector<1x128xf32>
    %128 = vector.broadcast %127 : vector<1x128xf32> to vector<8x128xf32>
    %129 = arith.mulf %126, %128 : vector<8x128xf32>
    %c0_63 = arith.constant 0 : index
    %c0_64 = arith.constant 0 : index
    %130 = vector.load %arg10[%c0_63, %c0_64] : memref<1x128xf32, #tpu.memory_space<vmem>>, vector<1x128xf32>
    %131 = vector.broadcast %130 : vector<1x128xf32> to vector<8x128xf32>
    %132 = arith.addf %129, %131 : vector<8x128xf32>
    %c0_65 = arith.constant 0 : index
    %c0_66 = arith.constant 0 : index
    %133 = vector.load %arg13[%c0_65, %c0_66] : memref<8x128xf32, #tpu.memory_space<vmem>>, vector<8x128xf32>
    tpu.vector_store %arg13[%c0_65, %c0_66], %132 {strides = array<i32>} : memref<8x128xf32, #tpu.memory_space<vmem>>, vector<8x128xf32>,
    return
  }
  func.func @transform_0(%arg0: i32) -> (i32, i32) {
    %c0_i32 = arith.constant 0 : i32
    %c0_i32_0 = arith.constant 0 : i32
    %c0_i32_1 = arith.constant 0 : i32
    return %c0_i32, %c0_i32_0 : i32, i32
  }
  func.func @transform_1(%arg0: i32) -> (i32, i32) {
    %c0_i32 = arith.constant 0 : i32
    %c0_i32_0 = arith.constant 0 : i32
    return %arg0, %c0_i32 : i32, i32
  }
  func.func @transform_2(%arg0: i32) -> (i32, i32) {
    %c0_i32 = arith.constant 0 : i32
    %c0_i32_0 = arith.constant 0 : i32
    %c0_i32_1 = arith.constant 0 : i32
    return %c0_i32, %c0_i32_0 : i32, i32
  }
  func.func @transform_3(%arg0: i32) -> (i32, i32) {
    %c0_i32 = arith.constant 0 : i32
    %c0_i32_0 = arith.constant 0 : i32
    %c0_i32_1 = arith.constant 0 : i32
    return %c0_i32, %c0_i32_0 : i32, i32
  }
  func.func @transform_4(%arg0: i32) -> (i32, i32, i32) {
    %c0_i32 = arith.constant 0 : i32
    %c0_i32_0 = arith.constant 0 : i32
    %c0_i32_1 = arith.constant 0 : i32
    %c0_i32_2 = arith.constant 0 : i32
    return %c0_i32, %c0_i32_0, %c0_i32_1 : i32, i32, i32
  }
  func.func @transform_5(%arg0: i32) -> (i32, i32, i32) {
    %c0_i32 = arith.constant 0 : i32
    %c0_i32_0 = arith.constant 0 : i32
    %c0_i32_1 = arith.constant 0 : i32
    %c0_i32_2 = arith.constant 0 : i32
    return %c0_i32, %c0_i32_0, %c0_i32_1 : i32, i32, i32
  }
  func.func @transform_6(%arg0: i32) -> (i32, i32) {
    %c0_i32 = arith.constant 0 : i32
    %c0_i32_0 = arith.constant 0 : i32
    %c0_i32_1 = arith.constant 0 : i32
    return %c0_i32, %c0_i32_0 : i32, i32
  }
  func.func @transform_7(%arg0: i32) -> (i32, i32) {
    %c0_i32 = arith.constant 0 : i32
    %c0_i32_0 = arith.constant 0 : i32
    %c0_i32_1 = arith.constant 0 : i32
    return %c0_i32, %c0_i32_0 : i32, i32
  }
  func.func @transform_8(%arg0: i32) -> (i32, i32) {
    %c0_i32 = arith.constant 0 : i32
    %c0_i32_0 = arith.constant 0 : i32
    %c0_i32_1 = arith.constant 0 : i32
    return %c0_i32, %c0_i32_0 : i32, i32
  }
  func.func @transform_9(%arg0: i32) -> (i32, i32) {
    %c0_i32 = arith.constant 0 : i32
    %c0_i32_0 = arith.constant 0 : i32
    %c0_i32_1 = arith.constant 0 : i32
    return %c0_i32, %c0_i32_0 : i32, i32
  }
  func.func @transform_10(%arg0: i32) -> (i32, i32) {
    %c0_i32 = arith.constant 0 : i32
    %c0_i32_0 = arith.constant 0 : i32
    %c0_i32_1 = arith.constant 0 : i32
    return %c0_i32, %c0_i32_0 : i32, i32
  }
  func.func @transform_11(%arg0: i32) -> (i32, i32) {
    %c0_i32 = arith.constant 0 : i32
    %c0_i32_0 = arith.constant 0 : i32
    %c0_i32_1 = arith.constant 0 : i32
    return %c0_i32, %c0_i32_0 : i32, i32
  }
  func.func @transform_12(%arg0: i32) -> (i32, i32) {
    %c0_i32 = arith.constant 0 : i32
    %c0_i32_0 = arith.constant 0 : i32
    return %arg0, %c0_i32 : i32, i32
  }
}

</mosaic_0001>

<llo_original>
// kernel: tpu_custom_call.1
$region0: #{tpu_custom_call.1}
  #allocation0 [shape = 'u32[]', space=smem, size = 0x4, offset = 0x4, fixed_abs, tag = 'smem constant byte address 0x4 - core index']
  #allocation1 [shape = 'u32[144,128]{1,0:T(1,128)}', space=vmem, size = 0x12000, scoped, tag = 'internal scratch']
  %s0 = inlined_call_operand.hbm [shape: s32[1,128], index: 0, kind: input, shape index: {}]
  %s1 = inlined_call_operand.hbm [shape: f32[8,128], index: 1, kind: input, shape index: {}]
  %s2 = inlined_call_operand.hbm [shape: f32[128,512], index: 2, kind: input, shape index: {}]
  %s3 = inlined_call_operand.vmem [shape: f32[1,512], index: 3, kind: input, shape index: {}]
  %s4 = inlined_call_operand.hbm [shape: bf16[4,128,128], index: 4, kind: input, shape index: {}]
  %s5 = inlined_call_operand.hbm [shape: bf16[4,128,128], index: 5, kind: input, shape index: {}]
  %s6 = inlined_call_operand.hbm [shape: f32[512,128], index: 6, kind: input, shape index: {}]
  %s7 = inlined_call_operand.vmem [shape: f32[1,128], index: 7, kind: input, shape index: {}]
  %s8 = inlined_call_operand.vmem [shape: f32[1,128], index: 8, kind: input, shape index: {}]
  %s9 = inlined_call_operand.vmem [shape: f32[1,128], index: 9, kind: input, shape index: {}]
  %s10 = inlined_call_operand.vmem [shape: f32[1,128], index: 10, kind: input, shape index: {}]
  %s11 = inlined_call_operand.vmem [shape: f32[1,128], index: 11, kind: input, shape index: {}]
  %s12 = inlined_call_operand.hbm [shape: f32[8,128], index: 12, kind: output, shape index: {}]
  %s13 = sld [smem:[#allocation0]]
  $region82: #{tpu_custom_call.1} parent=0
    _
  %s15 = ssub.s32 1, %s13
  %s16 = scalar_select 0, %s15, %s13
  $region1: #{tpu_custom_call.1} parent=0
    #allocation2 [shape = 'u8[512]{0}', space=vmem, size = 0x400, scoped, tag = 'input window, operand 0, single buffered']
    #allocation3 [shape = 's32[1]{0}', space=sflag, size = 0x4, scoped, tag = 'scoped memory for tpu_custom_call.1']
    #allocation4 [shape = 's32[1]{0}', space=sflag, size = 0x4, scoped, tag = 'scoped memory for tpu_custom_call.1']
    #allocation5 [shape = 'u8[4096]{0}', space=vmem, size = 0x1000, scoped, tag = 'input window, operand 1, single buffered']
    #allocation6 [shape = 's32[1]{0}', space=sflag, size = 0x4, scoped, tag = 'scoped memory for tpu_custom_call.1']
    #allocation7 [shape = 'u8[262144]{0}', space=vmem, size = 0x40000, scoped, tag = 'input window, operand 2, single buffered']
    #allocation8 [shape = 'u8[131072]{0}', space=vmem, size = 0x20000, scoped, tag = 'input window, operand 4, single buffered']
    #allocation9 [shape = 's32[1]{0}', space=sflag, size = 0x4, scoped, tag = 'scoped memory for tpu_custom_call.1']
    #allocation10 [shape = 'u8[131072]{0}', space=vmem, size = 0x20000, scoped, tag = 'input window, operand 5, single buffered']
    #allocation11 [shape = 'u8[262144]{0}', space=vmem, size = 0x40000, scoped, tag = 'input window, operand 6, single buffered']
    #allocation12 [shape = 's32[1]{0}', space=sflag, size = 0x4, scoped, tag = 'scoped memory for tpu_custom_call.1']
    #allocation13 [shape = 'u8[4096]{0}', space=vmem, size = 0x1000, scoped, tag = 'output window, operand 0, single buffered']
    %17 = vsyncpa [#allocation3], 0
    %18 = vsyncpa [#allocation6], 0
    %19 = vsyncpa [#allocation9], 0
    %20 = vsyncpa [#allocation12], 0
    %21 = vsyncpa [#allocation4], 0
    // Predicated region
    $region2: #{tpu_custom_call.1} parent=1 // pred_check
      _
    $region3: #{tpu_custom_call.1} parent=1 // pred_check_branch
      %23 = sbr.rel (0) target = $region5
    $region4: #{tpu_custom_call.1} parent=1 // pred_region
      %s25 = ssub.s32 16, 16
      %26 = vsyncadd [#allocation3], %s25
      %s28 = sshll.u32 [#allocation2], 4
      %s29 = int_to_ptr.vmem [resolvable:$true] %s28
      %31 = dma.hbm_to_vmem [thread:$0]  %s0, 16, %s29, [#allocation3]
    $region5: #{tpu_custom_call.1} parent=1 // pred_fallthru
      _
    // Predicated region
    $region6: #{tpu_custom_call.1} parent=1 // pred_check
      _
    $region7: #{tpu_custom_call.1} parent=1 // pred_check_branch
      %33 = sbr.rel (0) target = $region9
    $region8: #{tpu_custom_call.1} parent=1 // pred_region
      %s35 = ssub.s32 128, 128
      %36 = vsyncadd [#allocation6], %s35
      %s38 = sshll.u32 [#allocation5], 4
      %s39 = int_to_ptr.vmem [resolvable:$true] %s38
      %41 = dma.hbm_to_vmem [thread:$0]  %s1, 128, %s39, [#allocation6]
    $region9: #{tpu_custom_call.1} parent=1 // pred_fallthru
      _
    // Predicated region
    $region10: #{tpu_custom_call.1} parent=1 // pred_check
      _
    $region11: #{tpu_custom_call.1} parent=1 // pred_check_branch
      %43 = sbr.rel (0) target = $region13
    $region12: #{tpu_custom_call.1} parent=1 // pred_region
      %s45 = ssub.s32 8192, 8192
      %46 = vsyncadd [#allocation6], %s45
      %s47 = sshll.u32 [#allocation7], 4
      %s48 = int_to_ptr.vmem [resolvable:$true] %s47
      %53 = dma.hbm_to_vmem [thread:$0]  %s2, 8192, %s48, [#allocation6], 512, 512, 32
    $region13: #{tpu_custom_call.1} parent=1 // pred_fallthru
      _
    // Predicated region
    $region14: #{tpu_custom_call.1} parent=1 // pred_check
      _
    $region15: #{tpu_custom_call.1} parent=1 // pred_check_branch
      %55 = sbr.rel (0) target = $region17
    $region16: #{tpu_custom_call.1} parent=1 // pred_region
      _
    $region17: #{tpu_custom_call.1} parent=1 // pred_fallthru
      _
    // Predicated region
    $region18: #{tpu_custom_call.1} parent=1 // pred_check
      _
    $region19: #{tpu_custom_call.1} parent=1 // pred_check_branch
      %57 = sbr.rel (0) target = $region21
    $region20: #{tpu_custom_call.1} parent=1 // pred_region
      %s59 = ssub.s32 4096, 4096
      %60 = vsyncadd [#allocation9], %s59
      %s61 = sshll.u32 [#allocation8], 4
      %s62 = int_to_ptr.vmem [resolvable:$true] %s61
      %67 = dma.hbm_to_vmem [thread:$0]  %s4, 4096, %s62, [#allocation9], 64, 64, 4
    $region21: #{tpu_custom_call.1} parent=1 // pred_fallthru
      _
    // Predicated region
    $region22: #{tpu_custom_call.1} parent=1 // pred_check
      _
    $region23: #{tpu_custom_call.1} parent=1 // pred_check_branch
      %69 = sbr.rel (0) target = $region25
    $region24: #{tpu_custom_call.1} parent=1 // pred_region
      %s71 = ssub.s32 4096, 4096
      %72 = vsyncadd [#allocation9], %s71
      %s73 = sshll.u32 [#allocation10], 4
      %s74 = int_to_ptr.vmem [resolvable:$true] %s73
      %79 = dma.hbm_to_vmem [thread:$0]  %s5, 4096, %s74, [#allocation9], 64, 64, 4
    $region25: #{tpu_custom_call.1} parent=1 // pred_fallthru
      _
    // Predicated region
    $region26: #{tpu_custom_call.1} parent=1 // pred_check
      _
    $region27: #{tpu_custom_call.1} parent=1 // pred_check_branch
      %81 = sbr.rel (0) target = $region29
    $region28: #{tpu_custom_call.1} parent=1 // pred_region
      %s83 = ssub.s32 8192, 8192
      %84 = vsyncadd [#allocation12], %s83
      %s85 = sshll.u32 [#allocation11], 4
      %s86 = int_to_ptr.vmem [resolvable:$true] %s85
      %91 = dma.hbm_to_vmem [thread:$0]  %s6, 8192, %s86, [#allocation12], 128, 128, 8
    $region29: #{tpu_custom_call.1} parent=1 // pred_fallthru
      _
    // Predicated region
    $region30: #{tpu_custom_call.1} parent=1 // pred_check
      _
    $region31: #{tpu_custom_call.1} parent=1 // pred_check_branch
      %93 = sbr.rel (0) target = $region33
    $region32: #{tpu_custom_call.1} parent=1 // pred_region
      _
    $region33: #{tpu_custom_call.1} parent=1 // pred_fallthru
      _
    // Predicated region
    $region34: #{tpu_custom_call.1} parent=1 // pred_check
      _
    $region35: #{tpu_custom_call.1} parent=1 // pred_check_branch
      %95 = sbr.rel (0) target = $region37
    $region36: #{tpu_custom_call.1} parent=1 // pred_region
      _
    $region37: #{tpu_custom_call.1} parent=1 // pred_fallthru
      _
    // Predicated region
    $region38: #{tpu_custom_call.1} parent=1 // pred_check
      _
    $region39: #{tpu_custom_call.1} parent=1 // pred_check_branch
      %97 = sbr.rel (0) target = $region41
    $region40: #{tpu_custom_call.1} parent=1 // pred_region
      _
    $region41: #{tpu_custom_call.1} parent=1 // pred_fallthru
      _
    // Predicated region
    $region42: #{tpu_custom_call.1} parent=1 // pred_check
      _
    $region43: #{tpu_custom_call.1} parent=1 // pred_check_branch
      %99 = sbr.rel (0) target = $region45
    $region44: #{tpu_custom_call.1} parent=1 // pred_region
      _
    $region45: #{tpu_custom_call.1} parent=1 // pred_fallthru
      _
    // Predicated region
    $region46: #{tpu_custom_call.1} parent=1 // pred_check
      _
    $region47: #{tpu_custom_call.1} parent=1 // pred_check_branch
      %101 = sbr.rel (0) target = $region49
    $region48: #{tpu_custom_call.1} parent=1 // pred_region
      _
    $region49: #{tpu_custom_call.1} parent=1 // pred_fallthru
      _
    // Predicated region
    $region50: #{tpu_custom_call.1} parent=1 // pred_check
      _
    $region51: #{tpu_custom_call.1} parent=1 // pred_check_branch
      %103 = sbr.rel (0) target = $region53
    $region52: #{tpu_custom_call.1} parent=1 // pred_region
      %104 = dma.done [#allocation3], 16
    $region53: #{tpu_custom_call.1} parent=1 // pred_fallthru
      _
    // Predicated region
    $region54: #{tpu_custom_call.1} parent=1 // pred_check
      _
    $region55: #{tpu_custom_call.1} parent=1 // pred_check_branch
      %106 = sbr.rel (0) target = $region57
    $region56: #{tpu_custom_call.1} parent=1 // pred_region
      %107 = dma.done [#allocation6], 128
    $region57: #{tpu_custom_call.1} parent=1 // pred_fallthru
      _
    // Predicated region
    $region58: #{tpu_custom_call.1} parent=1 // pred_check
      _
    $region59: #{tpu_custom_call.1} parent=1 // pred_check_branch
      %109 = sbr.rel (0) target = $region61
    $region60: #{tpu_custom_call.1} parent=1 // pred_region
      %110 = dma.done [#allocation6], 8192
    $region61: #{tpu_custom_call.1} parent=1 // pred_fallthru
      _
    // Predicated region
    $region62: #{tpu_custom_call.1} parent=1 // pred_check
      _
    $region63: #{tpu_custom_call.1} parent=1 // pred_check_branch
      %112 = sbr.rel (0) target = $region65
    $region64: #{tpu_custom_call.1} parent=1 // pred_region
      %113 = dma.done [#allocation9], 4096
    $region65: #{tpu_custom_call.1} parent=1 // pred_fallthru
      _
    // Predicated region
    $region66: #{tpu_custom_call.1} parent=1 // pred_check
      _
    $region67: #{tpu_custom_call.1} parent=1 // pred_check_branch
      %115 = sbr.rel (0) target = $region69
    $region68: #{tpu_custom_call.1} parent=1 // pred_region
      %116 = dma.done [#allocation9], 4096
    $region69: #{tpu_custom_call.1} parent=1 // pred_fallthru
      _
    // Predicated region
    $region70: #{tpu_custom_call.1} parent=1 // pred_check
      _
    $region71: #{tpu_custom_call.1} parent=1 // pred_check_branch
      %118 = sbr.rel (0) target = $region73
    $region72: #{tpu_custom_call.1} parent=1 // pred_region
      %119 = dma.done [#allocation12], 8192
    $region73: #{tpu_custom_call.1} parent=1 // pred_fallthru
      _
    %v121 = vld [vmem:[#allocation5] sm:$0xff]
    %v122 = vld [vmem:[#allocation7] sm:$0xff]
    %v123 = vld [vmem:[#allocation7 + $0x8] sm:$0xff]
    %v124 = vld [vmem:[#allocation7 + $0x10] sm:$0xff]
    %v125 = vld [vmem:[#allocation7 + $0x18] sm:$0xff]
    %v126 = vld [vmem:[#allocation7 + $0x20] sm:$0xff]
    %v127 = vld [vmem:[#allocation7 + $0x28] sm:$0xff]
    %v128 = vld [vmem:[#allocation7 + $0x30] sm:$0xff]
    %v129 = vld [vmem:[#allocation7 + $0x38] sm:$0xff]
    %v130 = vld [vmem:[#allocation7 + $0x40] sm:$0xff]
    %v131 = vld [vmem:[#allocation7 + $0x48] sm:$0xff]
    %v132 = vld [vmem:[#allocation7 + $0x50] sm:$0xff]
    %v133 = vld [vmem:[#allocation7 + $0x58] sm:$0xff]
    %v134 = vld [vmem:[#allocation7 + $0x60] sm:$0xff]
    %v135 = vld [vmem:[#allocation7 + $0x68] sm:$0xff]
    %v136 = vld [vmem:[#allocation7 + $0x70] sm:$0xff]
    %v137 = vld [vmem:[#allocation7 + $0x78] sm:$0xff]
    %v138 = vld [vmem:[#allocation7 + $0x80] sm:$0xff]
    %v139 = vld [vmem:[#allocation7 + $0x88] sm:$0xff]
    %v140 = vld [vmem:[#allocation7 + $0x90] sm:$0xff]
    %v141 = vld [vmem:[#allocation7 + $0x98] sm:$0xff]
    %v142 = vld [vmem:[#allocation7 + $0xa0] sm:$0xff]
    %v143 = vld [vmem:[#allocation7 + $0xa8] sm:$0xff]
    %v144 = vld [vmem:[#allocation7 + $0xb0] sm:$0xff]
    %v145 = vld [vmem:[#allocation7 + $0xb8] sm:$0xff]
    %v146 = vld [vmem:[#allocation7 + $0xc0] sm:$0xff]
    %v147 = vld [vmem:[#allocation7 + $0xc8] sm:$0xff]
    %v148 = vld [vmem:[#allocation7 + $0xd0] sm:$0xff]
    %v149 = vld [vmem:[#allocation7 + $0xd8] sm:$0xff]
    %v150 = vld [vmem:[#allocation7 + $0xe0] sm:$0xff]
    %v151 = vld [vmem:[#allocation7 + $0xe8] sm:$0xff]
    %v152 = vld [vmem:[#allocation7 + $0xf0] sm:$0xff]
    %v153 = vld [vmem:[#allocation7 + $0xf8] sm:$0xff]
    %v154 = vld [vmem:[#allocation7 + $0x100] sm:$0xff]
    %v155 = vld [vmem:[#allocation7 + $0x108] sm:$0xff]
    %v156 = vld [vmem:[#allocation7 + $0x110] sm:$0xff]
    %v157 = vld [vmem:[#allocation7 + $0x118] sm:$0xff]
    %v158 = vld [vmem:[#allocation7 + $0x120] sm:$0xff]
    %v159 = vld [vmem:[#allocation7 + $0x128] sm:$0xff]
    %v160 = vld [vmem:[#allocation7 + $0x130] sm:$0xff]
    %v161 = vld [vmem:[#allocation7 + $0x138] sm:$0xff]
    %v162 = vld [vmem:[#allocation7 + $0x140] sm:$0xff]
    %v163 = vld [vmem:[#allocation7 + $0x148] sm:$0xff]
    %v164 = vld [vmem:[#allocation7 + $0x150] sm:$0xff]
    %v165 = vld [vmem:[#allocation7 + $0x158] sm:$0xff]
    %v166 = vld [vmem:[#allocation7 + $0x160] sm:$0xff]
    %v167 = vld [vmem:[#allocation7 + $0x168] sm:$0xff]
    %v168 = vld [vmem:[#allocation7 + $0x170] sm:$0xff]
    %v169 = vld [vmem:[#allocation7 + $0x178] sm:$0xff]
    %v170 = vld [vmem:[#allocation7 + $0x180] sm:$0xff]
    %v171 = vld [vmem:[#allocation7 + $0x188] sm:$0xff]
    %v172 = vld [vmem:[#allocation7 + $0x190] sm:$0xff]
    %v173 = vld [vmem:[#allocation7 + $0x198] sm:$0xff]
    %v174 = vld [vmem:[#allocation7 + $0x1a0] sm:$0xff]
    %v175 = vld [vmem:[#allocation7 + $0x1a8] sm:$0xff]
    %v176 = vld [vmem:[#allocation7 + $0x1b0] sm:$0xff]
    %v177 = vld [vmem:[#allocation7 + $0x1b8] sm:$0xff]
    %v178 = vld [vmem:[#allocation7 + $0x1c0] sm:$0xff]
    %v179 = vld [vmem:[#allocation7 + $0x1c8] sm:$0xff]
    %v180 = vld [vmem:[#allocation7 + $0x1d0] sm:$0xff]
    %v181 = vld [vmem:[#allocation7 + $0x1d8] sm:$0xff]
    %v182 = vld [vmem:[#allocation7 + $0x1e0] sm:$0xff]
    %v183 = vld [vmem:[#allocation7 + $0x1e8] sm:$0xff]
    %v184 = vld [vmem:[#allocation7 + $0x1f0] sm:$0xff]
    %v185 = vld [vmem:[#allocation7 + $0x1f8] sm:$0xff]
    %v186 = vld [vmem:[%s3] sm:$0xf]
    %v188 = vlaneseq
    %v189 = vshrl.u32 %v188, 7
    %v190 = vsub.s32 0, %v189
    %v191 = vrot.slane %v186, %v190
    %v192 = vlaneseq
    %v193 = vshrl.u32 %v192, 7
    %v194 = vsub.s32 1, %v193
    %v195 = vrot.slane %v186, %v194
    %v196 = vlaneseq
    %v197 = vshrl.u32 %v196, 7
    %v198 = vsub.s32 2, %v197
    %v199 = vrot.slane %v186, %v198
    %v200 = vlaneseq
    %v201 = vshrl.u32 %v200, 7
    %v202 = vsub.s32 3, %v201
    %v203 = vrot.slane %v186, %v202
    %208 = vmatprep.subr.mxu0 %v183
    %209 = vmatpush1.msra.mxu0 %v182
    %210 = vmatprep.subr.mxu0 %v179
    %211 = vmatpush1.msra.mxu0 %v178
    %212 = vmatprep.subr.mxu0 %v175
    %213 = vmatpush1.msra.mxu0 %v174
    %214 = vmatprep.subr.mxu0 %v171
    %215 = vmatpush1.msra.mxu0 %v170
    %216 = vmatprep.subr.mxu0 %v167
    %217 = vmatpush1.msra.mxu0 %v166
    %218 = vmatprep.subr.mxu0 %v163
    %219 = vmatpush1.msra.mxu0 %v162
    %220 = vmatprep.subr.mxu0 %v159
    %221 = vmatpush1.msra.mxu0 %v158
    %222 = vmatprep.subr.mxu0 %v155
    %223 = vmatpush1.msra.mxu0 %v154
    %224 = vmatprep.subr.mxu0 %v151
    %225 = vmatpush1.msra.mxu0 %v150
    %226 = vmatprep.subr.mxu0 %v147
    %227 = vmatpush1.msra.mxu0 %v146
    %228 = vmatprep.subr.mxu0 %v143
    %229 = vmatpush1.msra.mxu0 %v142
    %230 = vmatprep.subr.mxu0 %v139
    %231 = vmatpush1.msra.mxu0 %v138
    %232 = vmatprep.subr.mxu0 %v135
    %233 = vmatpush1.msra.mxu0 %v134
    %234 = vmatprep.subr.mxu0 %v131
    %235 = vmatpush1.msra.mxu0 %v130
    %236 = vmatprep.subr.mxu0 %v127
    %237 = vmatpush1.msra.mxu0 %v126
    %238 = vmatprep.subr.mxu0 %v123
    %239 = vmatpush1.msra.mxu0 %v122
    %240 = vmatprep.subr.mxu0 0.0
    %241 = vmatpush2.msra.mxu0 0.0
    %242 = vmatprep.subr.mxu0 0.0
    %243 = vmatpush2.msra.mxu0 0.0
    %244 = vmatprep.subr.mxu0 0.0
    %245 = vmatpush2.msra.mxu0 0.0
    %246 = vmatprep.subr.mxu0 0.0
    %247 = vmatpush2.msra.mxu0 0.0
    %248 = vmatprep.subr.mxu0 0.0
    %249 = vmatpush2.msra.mxu0 0.0
    %250 = vmatprep.subr.mxu0 0.0
    %251 = vmatpush2.msra.mxu0 0.0
    %252 = vmatprep.subr.mxu0 0.0
    %253 = vmatpush2.msra.mxu0 0.0
    %254 = vmatprep.subr.mxu0 0.0
    %255 = vmatpush2.msra.mxu0 0.0
    %256 = vmatprep.subr.mxu0 0.0
    %257 = vmatpush2.msra.mxu0 0.0
    %258 = vmatprep.subr.mxu0 0.0
    %259 = vmatpush2.msra.mxu0 0.0
    %260 = vmatprep.subr.mxu0 0.0
    %261 = vmatpush2.msra.mxu0 0.0
    %262 = vmatprep.subr.mxu0 0.0
    %263 = vmatpush2.msra.mxu0 0.0
    %264 = vmatprep.subr.mxu0 0.0
    %265 = vmatpush2.msra.mxu0 0.0
    %266 = vmatprep.subr.mxu0 0.0
    %267 = vmatpush2.msra.mxu0 0.0
    %268 = vmatprep.subr.mxu0 0.0
    %269 = vmatpush2.msra.mxu0 0.0
    %270 = vmatprep.subr.mxu0 0.0
    %271 = vmatpush2.msra.mxu0 0.0
    %272 = vmatprep.mubr.f32.mxu0 0.0
    %273 = vmatmul.mubr.f32.gmra.mxu0 %v121
    %v274 = vpop.f32.mrf.mxu0
    %v275 = vadd.f32 %v191, %v274
    %v276 = vpop.f32.mrf.mxu0
    %v277 = vadd.f32 %v195, %v276
    %278 = vdwg.mxu0
    %279 = vmatprep.subr.mxu0 %v185
    %280 = vmatpush1.msra.mxu0 %v184
    %281 = vmatprep.subr.mxu0 %v181
    %282 = vmatpush1.msra.mxu0 %v180
    %283 = vmatprep.subr.mxu0 %v177
    %284 = vmatpush1.msra.mxu0 %v176
    %285 = vmatprep.subr.mxu0 %v173
    %286 = vmatpush1.msra.mxu0 %v172
    %287 = vmatprep.subr.mxu0 %v169
    %288 = vmatpush1.msra.mxu0 %v168
    %289 = vmatprep.subr.mxu0 %v165
    %290 = vmatpush1.msra.mxu0 %v164
    %291 = vmatprep.subr.mxu0 %v161
    %292 = vmatpush1.msra.mxu0 %v160
    %293 = vmatprep.subr.mxu0 %v157
    %294 = vmatpush1.msra.mxu0 %v156
    %295 = vmatprep.subr.mxu0 %v153
    %296 = vmatpush1.msra.mxu0 %v152
    %297 = vmatprep.subr.mxu0 %v149
    %298 = vmatpush1.msra.mxu0 %v148
    %299 = vmatprep.subr.mxu0 %v145
    %300 = vmatpush1.msra.mxu0 %v144
    %301 = vmatprep.subr.mxu0 %v141
    %302 = vmatpush1.msra.mxu0 %v140
    %303 = vmatprep.subr.mxu0 %v137
    %304 = vmatpush1.msra.mxu0 %v136
    %305 = vmatprep.subr.mxu0 %v133
    %306 = vmatpush1.msra.mxu0 %v132
    %307 = vmatprep.subr.mxu0 %v129
    %308 = vmatpush1.msra.mxu0 %v128
    %309 = vmatprep.subr.mxu0 %v125
    %310 = vmatpush1.msra.mxu0 %v124
    %311 = vmatprep.subr.mxu0 0.0
    %312 = vmatpush2.msra.mxu0 0.0
    %313 = vmatprep.subr.mxu0 0.0
    %314 = vmatpush2.msra.mxu0 0.0
    %315 = vmatprep.subr.mxu0 0.0
    %316 = vmatpush2.msra.mxu0 0.0
    %317 = vmatprep.subr.mxu0 0.0
    %318 = vmatpush2.msra.mxu0 0.0
    %319 = vmatprep.subr.mxu0 0.0
    %320 = vmatpush2.msra.mxu0 0.0
    %321 = vmatprep.subr.mxu0 0.0
    %322 = vmatpush2.msra.mxu0 0.0
    %323 = vmatprep.subr.mxu0 0.0
    %324 = vmatpush2.msra.mxu0 0.0
    %325 = vmatprep.subr.mxu0 0.0
    %326 = vmatpush2.msra.mxu0 0.0
    %327 = vmatprep.subr.mxu0 0.0
    %328 = vmatpush2.msra.mxu0 0.0
    %329 = vmatprep.subr.mxu0 0.0
    %330 = vmatpush2.msra.mxu0 0.0
    %331 = vmatprep.subr.mxu0 0.0
    %332 = vmatpush2.msra.mxu0 0.0
    %333 = vmatprep.subr.mxu0 0.0
    %334 = vmatpush2.msra.mxu0 0.0
    %335 = vmatprep.subr.mxu0 0.0
    %336 = vmatpush2.msra.mxu0 0.0
    %337 = vmatprep.subr.mxu0 0.0
    %338 = vmatpush2.msra.mxu0 0.0
    %339 = vmatprep.subr.mxu0 0.0
    %340 = vmatpush2.msra.mxu0 0.0
    %341 = vmatprep.subr.mxu0 0.0
    %342 = vmatpush2.msra.mxu0 0.0
    %343 = vmatprep.mubr.f32.mxu0 0.0
    %344 = vmatmul.mubr.f32.gmra.mxu0 %v121
    %v345 = vpop.f32.mrf.mxu0
    %v346 = vadd.f32 %v199, %v345
    %v347 = vpop.f32.mrf.mxu0
    %v348 = vadd.f32 %v203, %v347
    %349 = vdwg.mxu0
    %v350 = vlaneseq
    %v351 = vshrl.u32 %v350, 7
    %s352 = smul.u32 0, 8
    %v353 = vstv %s352
    %v354 = vadd.s32 %v351, %v353
    %v355 = vld [vmem:[#allocation2] sm:$0x1]
    %v356 = vlaneseq
    %v357 = vshrl.u32 %v356, 7
    %v358 = vsub.s32 0, %v357
    %v359 = vrot.slane %v355, %v358
    %vm360 = vcmp.eq.s32.totalorder %v354, %v359
    %v361 = vsel %vm360, 1, 0
    %v362 = vcvt.s32.f32 %v361
    %v363 = vsub.f32 %v362, 1.0
    %v364 = vmul.f32 %v363, 1e+30
    %365 = vmax.xlane.f32.xlu0 %v362
    %v366 = vpop.xlane.xlu0 %365
    %v367 = vmul.f32 %v275, 0.35355338
    %v368 = vpack.c.bf16 %v367, %v367
    %v369 = vld [vmem:[#allocation8] sm:$0xf]
    %v370 = vld [vmem:[#allocation8 + $0x4] sm:$0xf]
    %v371 = vld [vmem:[#allocation8 + $0x8] sm:$0xf]
    %v372 = vld [vmem:[#allocation8 + $0xc] sm:$0xf]
    %v373 = vld [vmem:[#allocation8 + $0x10] sm:$0xf]
    %v374 = vld [vmem:[#allocation8 + $0x14] sm:$0xf]
    %v375 = vld [vmem:[#allocation8 + $0x18] sm:$0xf]
    %v376 = vld [vmem:[#allocation8 + $0x1c] sm:$0xf]
    %v377 = vld [vmem:[#allocation8 + $0x20] sm:$0xf]
    %v378 = vld [vmem:[#allocation8 + $0x24] sm:$0xf]
    %v379 = vld [vmem:[#allocation8 + $0x28] sm:$0xf]
    %v380 = vld [vmem:[#allocation8 + $0x2c] sm:$0xf]
    %v381 = vld [vmem:[#allocation8 + $0x30] sm:$0xf]
    %v382 = vld [vmem:[#allocation8 + $0x34] sm:$0xf]
    %v383 = vld [vmem:[#allocation8 + $0x38] sm:$0xf]
    %v384 = vld [vmem:[#allocation8 + $0x3c] sm:$0xf]
    %v385 = vld [vmem:[#allocation10] sm:$0xf]
    %v386 = vld [vmem:[#allocation10 + $0x4] sm:$0xf]
    %v387 = vld [vmem:[#allocation10 + $0x8] sm:$0xf]
    %v388 = vld [vmem:[#allocation10 + $0xc] sm:$0xf]
    %v389 = vld [vmem:[#allocation10 + $0x10] sm:$0xf]
    %v390 = vld [vmem:[#allocation10 + $0x14] sm:$0xf]
    %v391 = vld [vmem:[#allocation10 + $0x18] sm:$0xf]
    %v392 = vld [vmem:[#allocation10 + $0x1c] sm:$0xf]
    %v393 = vld [vmem:[#allocation10 + $0x20] sm:$0xf]
    %v394 = vld [vmem:[#allocation10 + $0x24] sm:$0xf]
    %v395 = vld [vmem:[#allocation10 + $0x28] sm:$0xf]
    %v396 = vld [vmem:[#allocation10 + $0x2c] sm:$0xf]
    %v397 = vld [vmem:[#allocation10 + $0x30] sm:$0xf]
    %v398 = vld [vmem:[#allocation10 + $0x34] sm:$0xf]
    %v399 = vld [vmem:[#allocation10 + $0x38] sm:$0xf]
    %v400 = vld [vmem:[#allocation10 + $0x3c] sm:$0xf]
    %v417 = vunpack.c.l.b16 %v369
    %v418 = vunpack.c.l.b16 %v370
    %v419 = vunpack.c.l.b16 %v371
    %v420 = vunpack.c.l.b16 %v372
    %v421 = vunpack.c.l.b16 %v373
    %v422 = vunpack.c.l.b16 %v374
    %v423 = vunpack.c.l.b16 %v375
    %v424 = vunpack.c.l.b16 %v376
    %v425 = vunpack.c.l.b16 %v377
    %v426 = vunpack.c.l.b16 %v378
    %v427 = vunpack.c.l.b16 %v379
    %v428 = vunpack.c.l.b16 %v380
    %v429 = vunpack.c.l.b16 %v381
    %v430 = vunpack.c.l.b16 %v382
    %v431 = vunpack.c.l.b16 %v383
    %v432 = vunpack.c.l.b16 %v384
    %v433 = vpack.c.b16 %v418, %v417
    %v434 = vpack.c.b16 %v420, %v419
    %v435 = vpack.c.b16 %v422, %v421
    %v436 = vpack.c.b16 %v424, %v423
    %v437 = vpack.c.b16 %v426, %v425
    %v438 = vpack.c.b16 %v428, %v427
    %v439 = vpack.c.b16 %v430, %v429
    %v440 = vpack.c.b16 %v432, %v431
    %449 = vmatprep.subr.bf16.mxu0 0
    %450 = vmatpush1.bf16.xpose.msra.mxu0 %v440
    %451 = vmatprep.subr.bf16.mxu0 0
    %452 = vmatpush1.bf16.xpose.msra.mxu0 %v439
    %453 = vmatprep.subr.bf16.mxu0 0
    %454 = vmatpush1.bf16.xpose.msra.mxu0 %v438
    %455 = vmatprep.subr.bf16.mxu0 0
    %456 = vmatpush1.bf16.xpose.msra.mxu0 %v437
    %457 = vmatprep.subr.bf16.mxu0 0
    %458 = vmatpush1.bf16.xpose.msra.mxu0 %v436
    %459 = vmatprep.subr.bf16.mxu0 0
    %460 = vmatpush1.bf16.xpose.msra.mxu0 %v435
    %461 = vmatprep.subr.bf16.mxu0 0
    %462 = vmatpush1.bf16.xpose.msra.mxu0 %v434
    %463 = vmatprep.subr.bf16.mxu0 0
    %464 = vmatpush1.bf16.xpose.msra.mxu0 %v433
    %465 = vmatprep.subr.bf16.mxu0 0
    %466 = vmatpush2.bf16.xpose.msra.mxu0 0
    %467 = vmatprep.subr.bf16.mxu0 0
    %468 = vmatpush2.bf16.xpose.msra.mxu0 0
    %469 = vmatprep.subr.bf16.mxu0 0
    %470 = vmatpush2.bf16.xpose.msra.mxu0 0
    %471 = vmatprep.subr.bf16.mxu0 0
    %472 = vmatpush2.bf16.xpose.msra.mxu0 0
    %473 = vmatprep.subr.bf16.mxu0 0
    %474 = vmatpush2.bf16.xpose.msra.mxu0 0
    %475 = vmatprep.subr.bf16.mxu0 0
    %476 = vmatpush2.bf16.xpose.msra.mxu0 0
    %477 = vmatprep.subr.bf16.mxu0 0
    %478 = vmatpush2.bf16.xpose.msra.mxu0 0
    %479 = vmatprep.subr.bf16.mxu0 0
    %480 = vmatpush2.bf16.xpose.msra.mxu0 0
    %481 = vmatprep.mubr.bf16.mxu0 0
    %482 = vmatmul.mubr.bf16.gmra.mxu0 %v368
    %v483 = vpop.f32.mrf.mxu0
    %v484 = vadd.f32 %v364, %v483
    %v485 = vpop.f32.mrf.mxu0
    %v486 = vpop.f32.mrf.mxu0
    %v487 = vpop.f32.mrf.mxu0
    %488 = vdwg.mxu0
    %489 = vmax.xlane.f32.xlu0 %v484
    %v490 = vpop.xlane.xlu0 %489
    %v491 = vsub.f32 %v484, %v490
    %v492 = vmul.f32 %v491, 1.442695
    %v493 = vpow.pop %v492
    %494 = vadd.xlane.f32.xlu0 %v493
    %v495 = vpop.xlane.xlu0 %494
    %v496 = vrcp.pop %v495
    %v497 = vmul.f32 %v493, %v496
    %v498 = vpack.c.bf16 %v497, %v497
    %v515 = vunpack.c.l.b16 %v385
    %v516 = vunpack.c.l.b16 %v386
    %v517 = vunpack.c.l.b16 %v387
    %v518 = vunpack.c.l.b16 %v388
    %v519 = vunpack.c.l.b16 %v389
    %v520 = vunpack.c.l.b16 %v390
    %v521 = vunpack.c.l.b16 %v391
    %v522 = vunpack.c.l.b16 %v392
    %v523 = vunpack.c.l.b16 %v393
    %v524 = vunpack.c.l.b16 %v394
    %v525 = vunpack.c.l.b16 %v395
    %v526 = vunpack.c.l.b16 %v396
    %v527 = vunpack.c.l.b16 %v397
    %v528 = vunpack.c.l.b16 %v398
    %v529 = vunpack.c.l.b16 %v399
    %v530 = vunpack.c.l.b16 %v400
    %v531 = vpack.c.b16 %v516, %v515
    %v532 = vpack.c.b16 %v518, %v517
    %v533 = vpack.c.b16 %v520, %v519
    %v534 = vpack.c.b16 %v522, %v521
    %v535 = vpack.c.b16 %v524, %v523
    %v536 = vpack.c.b16 %v526, %v525
    %v537 = vpack.c.b16 %v528, %v527
    %v538 = vpack.c.b16 %v530, %v529
    %547 = vmatprep.subr.bf16.mxu0 0
    %548 = vmatpush1.bf16.msra.mxu0 %v538
    %549 = vmatprep.subr.bf16.mxu0 0
    %550 = vmatpush1.bf16.msra.mxu0 %v537
    %551 = vmatprep.subr.bf16.mxu0 0
    %552 = vmatpush1.bf16.msra.mxu0 %v536
    %553 = vmatprep.subr.bf16.mxu0 0
    %554 = vmatpush1.bf16.msra.mxu0 %v535
    %555 = vmatprep.subr.bf16.mxu0 0
    %556 = vmatpush1.bf16.msra.mxu0 %v534
    %557 = vmatprep.subr.bf16.mxu0 0
    %558 = vmatpush1.bf16.msra.mxu0 %v533
    %559 = vmatprep.subr.bf16.mxu0 0
    %560 = vmatpush1.bf16.msra.mxu0 %v532
    %561 = vmatprep.subr.bf16.mxu0 0
    %562 = vmatpush1.bf16.msra.mxu0 %v531
    %563 = vmatprep.subr.bf16.mxu0 0
    %564 = vmatpush2.bf16.msra.mxu0 0
    %565 = vmatprep.subr.bf16.mxu0 0
    %566 = vmatpush2.bf16.msra.mxu0 0
    %567 = vmatprep.subr.bf16.mxu0 0
    %568 = vmatpush2.bf16.msra.mxu0 0
    %569 = vmatprep.subr.bf16.mxu0 0
    %570 = vmatpush2.bf16.msra.mxu0 0
    %571 = vmatprep.subr.bf16.mxu0 0
    %572 = vmatpush2.bf16.msra.mxu0 0
    %573 = vmatprep.subr.bf16.mxu0 0
    %574 = vmatpush2.bf16.msra.mxu0 0
    %575 = vmatprep.subr.bf16.mxu0 0
    %576 = vmatpush2.bf16.msra.mxu0 0
    %577 = vmatprep.subr.bf16.mxu0 0
    %578 = vmatpush2.bf16.msra.mxu0 0
    %579 = vmatprep.mubr.bf16.mxu0 0
    %580 = vmatmul.mubr.bf16.gmra.mxu0 %v498
    %v581 = vpop.f32.mrf.mxu0
    %v582 = vadd.f32 0.0, %v581
    %v583 = vpop.f32.mrf.mxu0
    %v584 = vpop.f32.mrf.mxu0
    %v585 = vpop.f32.mrf.mxu0
    %586 = vdwg.mxu0
    %v587 = vmul.f32 %v277, 0.35355338
    %v588 = vpack.c.bf16 %v587, %v587
    %s589 = scalar_lea.vmem [#allocation8], 64
    %v590 = vld [vmem:[%s589] sm:$0xf]
    %v591 = vld [vmem:[%s589 + $0x4] sm:$0xf]
    %v592 = vld [vmem:[%s589 + $0x8] sm:$0xf]
    %v593 = vld [vmem:[%s589 + $0xc] sm:$0xf]
    %v594 = vld [vmem:[%s589 + $0x10] sm:$0xf]
    %v595 = vld [vmem:[%s589 + $0x14] sm:$0xf]
    %v596 = vld [vmem:[%s589 + $0x18] sm:$0xf]
    %v597 = vld [vmem:[%s589 + $0x1c] sm:$0xf]
    %v598 = vld [vmem:[%s589 + $0x20] sm:$0xf]
    %v599 = vld [vmem:[%s589 + $0x24] sm:$0xf]
    %v600 = vld [vmem:[%s589 + $0x28] sm:$0xf]
    %v601 = vld [vmem:[%s589 + $0x2c] sm:$0xf]
    %v602 = vld [vmem:[%s589 + $0x30] sm:$0xf]
    %v603 = vld [vmem:[%s589 + $0x34] sm:$0xf]
    %v604 = vld [vmem:[%s589 + $0x38] sm:$0xf]
    %v605 = vld [vmem:[%s589 + $0x3c] sm:$0xf]
    %s606 = scalar_lea.vmem [#allocation10], 64
    %v607 = vld [vmem:[%s606] sm:$0xf]
    %v608 = vld [vmem:[%s606 + $0x4] sm:$0xf]
    %v609 = vld [vmem:[%s606 + $0x8] sm:$0xf]
    %v610 = vld [vmem:[%s606 + $0xc] sm:$0xf]
    %v611 = vld [vmem:[%s606 + $0x10] sm:$0xf]
    %v612 = vld [vmem:[%s606 + $0x14] sm:$0xf]
    %v613 = vld [vmem:[%s606 + $0x18] sm:$0xf]
    %v614 = vld [vmem:[%s606 + $0x1c] sm:$0xf]
    %v615 = vld [vmem:[%s606 + $0x20] sm:$0xf]
    %v616 = vld [vmem:[%s606 + $0x24] sm:$0xf]
    %v617 = vld [vmem:[%s606 + $0x28] sm:$0xf]
    %v618 = vld [vmem:[%s606 + $0x2c] sm:$0xf]
    %v619 = vld [vmem:[%s606 + $0x30] sm:$0xf]
    %v620 = vld [vmem:[%s606 + $0x34] sm:$0xf]
    %v621 = vld [vmem:[%s606 + $0x38] sm:$0xf]
    %v622 = vld [vmem:[%s606 + $0x3c] sm:$0xf]
    %v639 = vunpack.c.l.b16 %v590
    %v640 = vunpack.c.l.b16 %v591
    %v641 = vunpack.c.l.b16 %v592
    %v642 = vunpack.c.l.b16 %v593
    %v643 = vunpack.c.l.b16 %v594
    %v644 = vunpack.c.l.b16 %v595
    %v645 = vunpack.c.l.b16 %v596
    %v646 = vunpack.c.l.b16 %v597
    %v647 = vunpack.c.l.b16 %v598
    %v648 = vunpack.c.l.b16 %v599
    %v649 = vunpack.c.l.b16 %v600
    %v650 = vunpack.c.l.b16 %v601
    %v651 = vunpack.c.l.b16 %v602
    %v652 = vunpack.c.l.b16 %v603
    %v653 = vunpack.c.l.b16 %v604
    %v654 = vunpack.c.l.b16 %v605
    %v655 = vpack.c.b16 %v640, %v639
    %v656 = vpack.c.b16 %v642, %v641
    %v657 = vpack.c.b16 %v644, %v643
    %v658 = vpack.c.b16 %v646, %v645
    %v659 = vpack.c.b16 %v648, %v647
    %v660 = vpack.c.b16 %v650, %v649
    %v661 = vpack.c.b16 %v652, %v651
    %v662 = vpack.c.b16 %v654, %v653
    %671 = vmatprep.subr.bf16.mxu0 0
    %672 = vmatpush1.bf16.xpose.msra.mxu0 %v662
    %673 = vmatprep.subr.bf16.mxu0 0
    %674 = vmatpush1.bf16.xpose.msra.mxu0 %v661
    %675 = vmatprep.subr.bf16.mxu0 0
    %676 = vmatpush1.bf16.xpose.msra.mxu0 %v660
    %677 = vmatprep.subr.bf16.mxu0 0
    %678 = vmatpush1.bf16.xpose.msra.mxu0 %v659
    %679 = vmatprep.subr.bf16.mxu0 0
    %680 = vmatpush1.bf16.xpose.msra.mxu0 %v658
    %681 = vmatprep.subr.bf16.mxu0 0
    %682 = vmatpush1.bf16.xpose.msra.mxu0 %v657
    %683 = vmatprep.subr.bf16.mxu0 0
    %684 = vmatpush1.bf16.xpose.msra.mxu0 %v656
    %685 = vmatprep.subr.bf16.mxu0 0
    %686 = vmatpush1.bf16.xpose.msra.mxu0 %v655
    %687 = vmatprep.subr.bf16.mxu0 0
    %688 = vmatpush2.bf16.xpose.msra.mxu0 0
    %689 = vmatprep.subr.bf16.mxu0 0
    %690 = vmatpush2.bf16.xpose.msra.mxu0 0
    %691 = vmatprep.subr.bf16.mxu0 0
    %692 = vmatpush2.bf16.xpose.msra.mxu0 0
    %693 = vmatprep.subr.bf16.mxu0 0
    %694 = vmatpush2.bf16.xpose.msra.mxu0 0
    %695 = vmatprep.subr.bf16.mxu0 0
    %696 = vmatpush2.bf16.xpose.msra.mxu0 0
    %697 = vmatprep.subr.bf16.mxu0 0
    %698 = vmatpush2.bf16.xpose.msra.mxu0 0
    %699 = vmatprep.subr.bf16.mxu0 0
    %700 = vmatpush2.bf16.xpose.msra.mxu0 0
    %701 = vmatprep.subr.bf16.mxu0 0
    %702 = vmatpush2.bf16.xpose.msra.mxu0 0
    %703 = vmatprep.mubr.bf16.mxu0 0
    %704 = vmatmul.mubr.bf16.gmra.mxu0 %v588
    %v705 = vpop.f32.mrf.mxu0
    %v706 = vadd.f32 %v364, %v705
    %v707 = vpop.f32.mrf.mxu0
    %v708 = vpop.f32.mrf.mxu0
    %v709 = vpop.f32.mrf.mxu0
    %710 = vdwg.mxu0
    %711 = vmax.xlane.f32.xlu0 %v706
    %v712 = vpop.xlane.xlu0 %711
    %v713 = vsub.f32 %v706, %v712
    %v714 = vmul.f32 %v713, 1.442695
    %v715 = vpow.pop %v714
    %716 = vadd.xlane.f32.xlu0 %v715
    %v717 = vpop.xlane.xlu0 %716
    %v718 = vrcp.pop %v717
    %v719 = vmul.f32 %v715, %v718
    %v720 = vpack.c.bf16 %v719, %v719
    %v737 = vunpack.c.l.b16 %v607
    %v738 = vunpack.c.l.b16 %v608
    %v739 = vunpack.c.l.b16 %v609
    %v740 = vunpack.c.l.b16 %v610
    %v741 = vunpack.c.l.b16 %v611
    %v742 = vunpack.c.l.b16 %v612
    %v743 = vunpack.c.l.b16 %v613
    %v744 = vunpack.c.l.b16 %v614
    %v745 = vunpack.c.l.b16 %v615
    %v746 = vunpack.c.l.b16 %v616
    %v747 = vunpack.c.l.b16 %v617
    %v748 = vunpack.c.l.b16 %v618
    %v749 = vunpack.c.l.b16 %v619
    %v750 = vunpack.c.l.b16 %v620
    %v751 = vunpack.c.l.b16 %v621
    %v752 = vunpack.c.l.b16 %v622
    %v753 = vpack.c.b16 %v738, %v737
    %v754 = vpack.c.b16 %v740, %v739
    %v755 = vpack.c.b16 %v742, %v741
    %v756 = vpack.c.b16 %v744, %v743
    %v757 = vpack.c.b16 %v746, %v745
    %v758 = vpack.c.b16 %v748, %v747
    %v759 = vpack.c.b16 %v750, %v749
    %v760 = vpack.c.b16 %v752, %v751
    %769 = vmatprep.subr.bf16.mxu0 0
    %770 = vmatpush1.bf16.msra.mxu0 %v760
    %771 = vmatprep.subr.bf16.mxu0 0
    %772 = vmatpush1.bf16.msra.mxu0 %v759
    %773 = vmatprep.subr.bf16.mxu0 0
    %774 = vmatpush1.bf16.msra.mxu0 %v758
    %775 = vmatprep.subr.bf16.mxu0 0
    %776 = vmatpush1.bf16.msra.mxu0 %v757
    %777 = vmatprep.subr.bf16.mxu0 0
    %778 = vmatpush1.bf16.msra.mxu0 %v756
    %779 = vmatprep.subr.bf16.mxu0 0
    %780 = vmatpush1.bf16.msra.mxu0 %v755
    %781 = vmatprep.subr.bf16.mxu0 0
    %782 = vmatpush1.bf16.msra.mxu0 %v754
    %783 = vmatprep.subr.bf16.mxu0 0
    %784 = vmatpush1.bf16.msra.mxu0 %v753
    %785 = vmatprep.subr.bf16.mxu0 0
    %786 = vmatpush2.bf16.msra.mxu0 0
    %787 = vmatprep.subr.bf16.mxu0 0
    %788 = vmatpush2.bf16.msra.mxu0 0
    %789 = vmatprep.subr.bf16.mxu0 0
    %790 = vmatpush2.bf16.msra.mxu0 0
    %791 = vmatprep.subr.bf16.mxu0 0
    %792 = vmatpush2.bf16.msra.mxu0 0
    %793 = vmatprep.subr.bf16.mxu0 0
    %794 = vmatpush2.bf16.msra.mxu0 0
    %795 = vmatprep.subr.bf16.mxu0 0
    %796 = vmatpush2.bf16.msra.mxu0 0
    %797 = vmatprep.subr.bf16.mxu0 0
    %798 = vmatpush2.bf16.msra.mxu0 0
    %799 = vmatprep.subr.bf16.mxu0 0
    %800 = vmatpush2.bf16.msra.mxu0 0
    %801 = vmatprep.mubr.bf16.mxu0 0
    %802 = vmatmul.mubr.bf16.gmra.mxu0 %v720
    %v803 = vpop.f32.mrf.mxu0
    %v804 = vadd.f32 0.0, %v803
    %v805 = vpop.f32.mrf.mxu0
    %v806 = vpop.f32.mrf.mxu0
    %v807 = vpop.f32.mrf.mxu0
    %808 = vdwg.mxu0
    %v809 = vmul.f32 %v346, 0.35355338
    %v810 = vpack.c.bf16 %v809, %v809
    %s811 = scalar_lea.vmem [#allocation8], 128
    %v812 = vld [vmem:[%s811] sm:$0xf]
    %v813 = vld [vmem:[%s811 + $0x4] sm:$0xf]
    %v814 = vld [vmem:[%s811 + $0x8] sm:$0xf]
    %v815 = vld [vmem:[%s811 + $0xc] sm:$0xf]
    %v816 = vld [vmem:[%s811 + $0x10] sm:$0xf]
    %v817 = vld [vmem:[%s811 + $0x14] sm:$0xf]
    %v818 = vld [vmem:[%s811 + $0x18] sm:$0xf]
    %v819 = vld [vmem:[%s811 + $0x1c] sm:$0xf]
    %v820 = vld [vmem:[%s811 + $0x20] sm:$0xf]
    %v821 = vld [vmem:[%s811 + $0x24] sm:$0xf]
    %v822 = vld [vmem:[%s811 + $0x28] sm:$0xf]
    %v823 = vld [vmem:[%s811 + $0x2c] sm:$0xf]
    %v824 = vld [vmem:[%s811 + $0x30] sm:$0xf]
    %v825 = vld [vmem:[%s811 + $0x34] sm:$0xf]
    %v826 = vld [vmem:[%s811 + $0x38] sm:$0xf]
    %v827 = vld [vmem:[%s811 + $0x3c] sm:$0xf]
    %s828 = scalar_lea.vmem [#allocation10], 128
    %v829 = vld [vmem:[%s828] sm:$0xf]
    %v830 = vld [vmem:[%s828 + $0x4] sm:$0xf]
    %v831 = vld [vmem:[%s828 + $0x8] sm:$0xf]
    %v832 = vld [vmem:[%s828 + $0xc] sm:$0xf]
    %v833 = vld [vmem:[%s828 + $0x10] sm:$0xf]
    %v834 = vld [vmem:[%s828 + $0x14] sm:$0xf]
    %v835 = vld [vmem:[%s828 + $0x18] sm:$0xf]
    %v836 = vld [vmem:[%s828 + $0x1c] sm:$0xf]
    %v837 = vld [vmem:[%s828 + $0x20] sm:$0xf]
    %v838 = vld [vmem:[%s828 + $0x24] sm:$0xf]
    %v839 = vld [vmem:[%s828 + $0x28] sm:$0xf]
    %v840 = vld [vmem:[%s828 + $0x2c] sm:$0xf]
    %v841 = vld [vmem:[%s828 + $0x30] sm:$0xf]
    %v842 = vld [vmem:[%s828 + $0x34] sm:$0xf]
    %v843 = vld [vmem:[%s828 + $0x38] sm:$0xf]
    %v844 = vld [vmem:[%s828 + $0x3c] sm:$0xf]
    %v861 = vunpack.c.l.b16 %v812
    %v862 = vunpack.c.l.b16 %v813
    %v863 = vunpack.c.l.b16 %v814
    %v864 = vunpack.c.l.b16 %v815
    %v865 = vunpack.c.l.b16 %v816
    %v866 = vunpack.c.l.b16 %v817
    %v867 = vunpack.c.l.b16 %v818
    %v868 = vunpack.c.l.b16 %v819
    %v869 = vunpack.c.l.b16 %v820
    %v870 = vunpack.c.l.b16 %v821
    %v871 = vunpack.c.l.b16 %v822
    %v872 = vunpack.c.l.b16 %v823
    %v873 = vunpack.c.l.b16 %v824
    %v874 = vunpack.c.l.b16 %v825
    %v875 = vunpack.c.l.b16 %v826
    %v876 = vunpack.c.l.b16 %v827
    %v877 = vpack.c.b16 %v862, %v861
    %v878 = vpack.c.b16 %v864, %v863
    %v879 = vpack.c.b16 %v866, %v865
    %v880 = vpack.c.b16 %v868, %v867
    %v881 = vpack.c.b16 %v870, %v869
    %v882 = vpack.c.b16 %v872, %v871
    %v883 = vpack.c.b16 %v874, %v873
    %v884 = vpack.c.b16 %v876, %v875
    %893 = vmatprep.subr.bf16.mxu0 0
    %894 = vmatpush1.bf16.xpose.msra.mxu0 %v884
    %895 = vmatprep.subr.bf16.mxu0 0
    %896 = vmatpush1.bf16.xpose.msra.mxu0 %v883
    %897 = vmatprep.subr.bf16.mxu0 0
    %898 = vmatpush1.bf16.xpose.msra.mxu0 %v882
    %899 = vmatprep.subr.bf16.mxu0 0
    %900 = vmatpush1.bf16.xpose.msra.mxu0 %v881
    %901 = vmatprep.subr.bf16.mxu0 0
    %902 = vmatpush1.bf16.xpose.msra.mxu0 %v880
    %903 = vmatprep.subr.bf16.mxu0 0
    %904 = vmatpush1.bf16.xpose.msra.mxu0 %v879
    %905 = vmatprep.subr.bf16.mxu0 0
    %906 = vmatpush1.bf16.xpose.msra.mxu0 %v878
    %907 = vmatprep.subr.bf16.mxu0 0
    %908 = vmatpush1.bf16.xpose.msra.mxu0 %v877
    %909 = vmatprep.subr.bf16.mxu0 0
    %910 = vmatpush2.bf16.xpose.msra.mxu0 0
    %911 = vmatprep.subr.bf16.mxu0 0
    %912 = vmatpush2.bf16.xpose.msra.mxu0 0
    %913 = vmatprep.subr.bf16.mxu0 0
    %914 = vmatpush2.bf16.xpose.msra.mxu0 0
    %915 = vmatprep.subr.bf16.mxu0 0
    %916 = vmatpush2.bf16.xpose.msra.mxu0 0
    %917 = vmatprep.subr.bf16.mxu0 0
    %918 = vmatpush2.bf16.xpose.msra.mxu0 0
    %919 = vmatprep.subr.bf16.mxu0 0
    %920 = vmatpush2.bf16.xpose.msra.mxu0 0
    %921 = vmatprep.subr.bf16.mxu0 0
    %922 = vmatpush2.bf16.xpose.msra.mxu0 0
    %923 = vmatprep.subr.bf16.mxu0 0
    %924 = vmatpush2.bf16.xpose.msra.mxu0 0
    %925 = vmatprep.mubr.bf16.mxu0 0
    %926 = vmatmul.mubr.bf16.gmra.mxu0 %v810
    %v927 = vpop.f32.mrf.mxu0
    %v928 = vadd.f32 %v364, %v927
    %v929 = vpop.f32.mrf.mxu0
    %v930 = vpop.f32.mrf.mxu0
    %v931 = vpop.f32.mrf.mxu0
    %932 = vdwg.mxu0
    %933 = vmax.xlane.f32.xlu0 %v928
    %v934 = vpop.xlane.xlu0 %933
    %v935 = vsub.f32 %v928, %v934
    %v936 = vmul.f32 %v935, 1.442695
    %v937 = vpow.pop %v936
    %938 = vadd.xlane.f32.xlu0 %v937
    %v939 = vpop.xlane.xlu0 %938
    %v940 = vrcp.pop %v939
    %v941 = vmul.f32 %v937, %v940
    %v942 = vpack.c.bf16 %v941, %v941
    %v959 = vunpack.c.l.b16 %v829
    %v960 = vunpack.c.l.b16 %v830
    %v961 = vunpack.c.l.b16 %v831
    %v962 = vunpack.c.l.b16 %v832
    %v963 = vunpack.c.l.b16 %v833
    %v964 = vunpack.c.l.b16 %v834
    %v965 = vunpack.c.l.b16 %v835
    %v966 = vunpack.c.l.b16 %v836
    %v967 = vunpack.c.l.b16 %v837
    %v968 = vunpack.c.l.b16 %v838
    %v969 = vunpack.c.l.b16 %v839
    %v970 = vunpack.c.l.b16 %v840
    %v971 = vunpack.c.l.b16 %v841
    %v972 = vunpack.c.l.b16 %v842
    %v973 = vunpack.c.l.b16 %v843
    %v974 = vunpack.c.l.b16 %v844
    %v975 = vpack.c.b16 %v960, %v959
    %v976 = vpack.c.b16 %v962, %v961
    %v977 = vpack.c.b16 %v964, %v963
    %v978 = vpack.c.b16 %v966, %v965
    %v979 = vpack.c.b16 %v968, %v967
    %v980 = vpack.c.b16 %v970, %v969
    %v981 = vpack.c.b16 %v972, %v971
    %v982 = vpack.c.b16 %v974, %v973
    %991 = vmatprep.subr.bf16.mxu0 0
    %992 = vmatpush1.bf16.msra.mxu0 %v982
    %993 = vmatprep.subr.bf16.mxu0 0
    %994 = vmatpush1.bf16.msra.mxu0 %v981
    %995 = vmatprep.subr.bf16.mxu0 0
    %996 = vmatpush1.bf16.msra.mxu0 %v980
    %997 = vmatprep.subr.bf16.mxu0 0
    %998 = vmatpush1.bf16.msra.mxu0 %v979
    %999 = vmatprep.subr.bf16.mxu0 0
    %1000 = vmatpush1.bf16.msra.mxu0 %v978
    %1001 = vmatprep.subr.bf16.mxu0 0
    %1002 = vmatpush1.bf16.msra.mxu0 %v977
    %1003 = vmatprep.subr.bf16.mxu0 0
    %1004 = vmatpush1.bf16.msra.mxu0 %v976
    %1005 = vmatprep.subr.bf16.mxu0 0
    %1006 = vmatpush1.bf16.msra.mxu0 %v975
    %1007 = vmatprep.subr.bf16.mxu0 0
    %1008 = vmatpush2.bf16.msra.mxu0 0
    %1009 = vmatprep.subr.bf16.mxu0 0
    %1010 = vmatpush2.bf16.msra.mxu0 0
    %1011 = vmatprep.subr.bf16.mxu0 0
    %1012 = vmatpush2.bf16.msra.mxu0 0
    %1013 = vmatprep.subr.bf16.mxu0 0
    %1014 = vmatpush2.bf16.msra.mxu0 0
    %1015 = vmatprep.subr.bf16.mxu0 0
    %1016 = vmatpush2.bf16.msra.mxu0 0
    %1017 = vmatprep.subr.bf16.mxu0 0
    %1018 = vmatpush2.bf16.msra.mxu0 0
    %1019 = vmatprep.subr.bf16.mxu0 0
    %1020 = vmatpush2.bf16.msra.mxu0 0
    %1021 = vmatprep.subr.bf16.mxu0 0
    %1022 = vmatpush2.bf16.msra.mxu0 0
    %1023 = vmatprep.mubr.bf16.mxu0 0
    %1024 = vmatmul.mubr.bf16.gmra.mxu0 %v942
    %v1025 = vpop.f32.mrf.mxu0
    %v1026 = vadd.f32 0.0, %v1025
    %v1027 = vpop.f32.mrf.mxu0
    %v1028 = vpop.f32.mrf.mxu0
    %v1029 = vpop.f32.mrf.mxu0
    %1030 = vdwg.mxu0
    %v1031 = vmul.f32 %v348, 0.35355338
    %v1032 = vpack.c.bf16 %v1031, %v1031
    %s1033 = scalar_lea.vmem [#allocation8], 192
    %v1034 = vld [vmem:[%s1033] sm:$0xf]
    %v1035 = vld [vmem:[%s1033 + $0x4] sm:$0xf]
    %v1036 = vld [vmem:[%s1033 + $0x8] sm:$0xf]
    %v1037 = vld [vmem:[%s1033 + $0xc] sm:$0xf]
    %v1038 = vld [vmem:[%s1033 + $0x10] sm:$0xf]
    %v1039 = vld [vmem:[%s1033 + $0x14] sm:$0xf]
    %v1040 = vld [vmem:[%s1033 + $0x18] sm:$0xf]
    %v1041 = vld [vmem:[%s1033 + $0x1c] sm:$0xf]
    %v1042 = vld [vmem:[%s1033 + $0x20] sm:$0xf]
    %v1043 = vld [vmem:[%s1033 + $0x24] sm:$0xf]
    %v1044 = vld [vmem:[%s1033 + $0x28] sm:$0xf]
    %v1045 = vld [vmem:[%s1033 + $0x2c] sm:$0xf]
    %v1046 = vld [vmem:[%s1033 + $0x30] sm:$0xf]
    %v1047 = vld [vmem:[%s1033 + $0x34] sm:$0xf]
    %v1048 = vld [vmem:[%s1033 + $0x38] sm:$0xf]
    %v1049 = vld [vmem:[%s1033 + $0x3c] sm:$0xf]
    %s1050 = scalar_lea.vmem [#allocation10], 192
    %v1051 = vld [vmem:[%s1050] sm:$0xf]
    %v1052 = vld [vmem:[%s1050 + $0x4] sm:$0xf]
    %v1053 = vld [vmem:[%s1050 + $0x8] sm:$0xf]
    %v1054 = vld [vmem:[%s1050 + $0xc] sm:$0xf]
    %v1055 = vld [vmem:[%s1050 + $0x10] sm:$0xf]
    %v1056 = vld [vmem:[%s1050 + $0x14] sm:$0xf]
    %v1057 = vld [vmem:[%s1050 + $0x18] sm:$0xf]
    %v1058 = vld [vmem:[%s1050 + $0x1c] sm:$0xf]
    %v1059 = vld [vmem:[%s1050 + $0x20] sm:$0xf]
    %v1060 = vld [vmem:[%s1050 + $0x24] sm:$0xf]
    %v1061 = vld [vmem:[%s1050 + $0x28] sm:$0xf]
    %v1062 = vld [vmem:[%s1050 + $0x2c] sm:$0xf]
    %v1063 = vld [vmem:[%s1050 + $0x30] sm:$0xf]
    %v1064 = vld [vmem:[%s1050 + $0x34] sm:$0xf]
    %v1065 = vld [vmem:[%s1050 + $0x38] sm:$0xf]
    %v1066 = vld [vmem:[%s1050 + $0x3c] sm:$0xf]
    %v1083 = vunpack.c.l.b16 %v1034
    %v1084 = vunpack.c.l.b16 %v1035
    %v1085 = vunpack.c.l.b16 %v1036
    %v1086 = vunpack.c.l.b16 %v1037
    %v1087 = vunpack.c.l.b16 %v1038
    %v1088 = vunpack.c.l.b16 %v1039
    %v1089 = vunpack.c.l.b16 %v1040
    %v1090 = vunpack.c.l.b16 %v1041
    %v1091 = vunpack.c.l.b16 %v1042
    %v1092 = vunpack.c.l.b16 %v1043
    %v1093 = vunpack.c.l.b16 %v1044
    %v1094 = vunpack.c.l.b16 %v1045
    %v1095 = vunpack.c.l.b16 %v1046
    %v1096 = vunpack.c.l.b16 %v1047
    %v1097 = vunpack.c.l.b16 %v1048
    %v1098 = vunpack.c.l.b16 %v1049
    %v1099 = vpack.c.b16 %v1084, %v1083
    %v1100 = vpack.c.b16 %v1086, %v1085
    %v1101 = vpack.c.b16 %v1088, %v1087
    %v1102 = vpack.c.b16 %v1090, %v1089
    %v1103 = vpack.c.b16 %v1092, %v1091
    %v1104 = vpack.c.b16 %v1094, %v1093
    %v1105 = vpack.c.b16 %v1096, %v1095
    %v1106 = vpack.c.b16 %v1098, %v1097
    %1115 = vmatprep.subr.bf16.mxu0 0
    %1116 = vmatpush1.bf16.xpose.msra.mxu0 %v1106
    %1117 = vmatprep.subr.bf16.mxu0 0
    %1118 = vmatpush1.bf16.xpose.msra.mxu0 %v1105
    %1119 = vmatprep.subr.bf16.mxu0 0
    %1120 = vmatpush1.bf16.xpose.msra.mxu0 %v1104
    %1121 = vmatprep.subr.bf16.mxu0 0
    %1122 = vmatpush1.bf16.xpose.msra.mxu0 %v1103
    %1123 = vmatprep.subr.bf16.mxu0 0
    %1124 = vmatpush1.bf16.xpose.msra.mxu0 %v1102
    %1125 = vmatprep.subr.bf16.mxu0 0
    %1126 = vmatpush1.bf16.xpose.msra.mxu0 %v1101
    %1127 = vmatprep.subr.bf16.mxu0 0
    %1128 = vmatpush1.bf16.xpose.msra.mxu0 %v1100
    %1129 = vmatprep.subr.bf16.mxu0 0
    %1130 = vmatpush1.bf16.xpose.msra.mxu0 %v1099
    %1131 = vmatprep.subr.bf16.mxu0 0
    %1132 = vmatpush2.bf16.xpose.msra.mxu0 0
    %1133 = vmatprep.subr.bf16.mxu0 0
    %1134 = vmatpush2.bf16.xpose.msra.mxu0 0
    %1135 = vmatprep.subr.bf16.mxu0 0
    %1136 = vmatpush2.bf16.xpose.msra.mxu0 0
    %1137 = vmatprep.subr.bf16.mxu0 0
    %1138 = vmatpush2.bf16.xpose.msra.mxu0 0
    %1139 = vmatprep.subr.bf16.mxu0 0
    %1140 = vmatpush2.bf16.xpose.msra.mxu0 0
    %1141 = vmatprep.subr.bf16.mxu0 0
    %1142 = vmatpush2.bf16.xpose.msra.mxu0 0
    %1143 = vmatprep.subr.bf16.mxu0 0
    %1144 = vmatpush2.bf16.xpose.msra.mxu0 0
    %1145 = vmatprep.subr.bf16.mxu0 0
    %1146 = vmatpush2.bf16.xpose.msra.mxu0 0
    %1147 = vmatprep.mubr.bf16.mxu0 0
    %1148 = vmatmul.mubr.bf16.gmra.mxu0 %v1032
    %v1149 = vpop.f32.mrf.mxu0
    %v1150 = vadd.f32 %v364, %v1149
    %v1151 = vpop.f32.mrf.mxu0
    %v1152 = vpop.f32.mrf.mxu0
    %v1153 = vpop.f32.mrf.mxu0
    %1154 = vdwg.mxu0
    %1155 = vmax.xlane.f32.xlu0 %v1150
    %v1156 = vpop.xlane.xlu0 %1155
    %v1157 = vsub.f32 %v1150, %v1156
    %v1158 = vmul.f32 %v1157, 1.442695
    %v1159 = vpow.pop %v1158
    %1160 = vadd.xlane.f32.xlu0 %v1159
    %v1161 = vpop.xlane.xlu0 %1160
    %v1162 = vrcp.pop %v1161
    %v1163 = vmul.f32 %v1159, %v1162
    %v1164 = vpack.c.bf16 %v1163, %v1163
    %v1181 = vunpack.c.l.b16 %v1051
    %v1182 = vunpack.c.l.b16 %v1052
    %v1183 = vunpack.c.l.b16 %v1053
    %v1184 = vunpack.c.l.b16 %v1054
    %v1185 = vunpack.c.l.b16 %v1055
    %v1186 = vunpack.c.l.b16 %v1056
    %v1187 = vunpack.c.l.b16 %v1057
    %v1188 = vunpack.c.l.b16 %v1058
    %v1189 = vunpack.c.l.b16 %v1059
    %v1190 = vunpack.c.l.b16 %v1060
    %v1191 = vunpack.c.l.b16 %v1061
    %v1192 = vunpack.c.l.b16 %v1062
    %v1193 = vunpack.c.l.b16 %v1063
    %v1194 = vunpack.c.l.b16 %v1064
    %v1195 = vunpack.c.l.b16 %v1065
    %v1196 = vunpack.c.l.b16 %v1066
    %v1197 = vpack.c.b16 %v1182, %v1181
    %v1198 = vpack.c.b16 %v1184, %v1183
    %v1199 = vpack.c.b16 %v1186, %v1185
    %v1200 = vpack.c.b16 %v1188, %v1187
    %v1201 = vpack.c.b16 %v1190, %v1189
    %v1202 = vpack.c.b16 %v1192, %v1191
    %v1203 = vpack.c.b16 %v1194, %v1193
    %v1204 = vpack.c.b16 %v1196, %v1195
    %1213 = vmatprep.subr.bf16.mxu0 0
    %1214 = vmatpush1.bf16.msra.mxu0 %v1204
    %1215 = vmatprep.subr.bf16.mxu0 0
    %1216 = vmatpush1.bf16.msra.mxu0 %v1203
    %1217 = vmatprep.subr.bf16.mxu0 0
    %1218 = vmatpush1.bf16.msra.mxu0 %v1202
    %1219 = vmatprep.subr.bf16.mxu0 0
    %1220 = vmatpush1.bf16.msra.mxu0 %v1201
    %1221 = vmatprep.subr.bf16.mxu0 0
    %1222 = vmatpush1.bf16.msra.mxu0 %v1200
    %1223 = vmatprep.subr.bf16.mxu0 0
    %1224 = vmatpush1.bf16.msra.mxu0 %v1199
    %1225 = vmatprep.subr.bf16.mxu0 0
    %1226 = vmatpush1.bf16.msra.mxu0 %v1198
    %1227 = vmatprep.subr.bf16.mxu0 0
    %1228 = vmatpush1.bf16.msra.mxu0 %v1197
    %1229 = vmatprep.subr.bf16.mxu0 0
    %1230 = vmatpush2.bf16.msra.mxu0 0
    %1231 = vmatprep.subr.bf16.mxu0 0
    %1232 = vmatpush2.bf16.msra.mxu0 0
    %1233 = vmatprep.subr.bf16.mxu0 0
    %1234 = vmatpush2.bf16.msra.mxu0 0
    %1235 = vmatprep.subr.bf16.mxu0 0
    %1236 = vmatpush2.bf16.msra.mxu0 0
    %1237 = vmatprep.subr.bf16.mxu0 0
    %1238 = vmatpush2.bf16.msra.mxu0 0
    %1239 = vmatprep.subr.bf16.mxu0 0
    %1240 = vmatpush2.bf16.msra.mxu0 0
    %1241 = vmatprep.subr.bf16.mxu0 0
    %1242 = vmatpush2.bf16.msra.mxu0 0
    %1243 = vmatprep.subr.bf16.mxu0 0
    %1244 = vmatpush2.bf16.msra.mxu0 0
    %1245 = vmatprep.mubr.bf16.mxu0 0
    %1246 = vmatmul.mubr.bf16.gmra.mxu0 %v1164
    %v1247 = vpop.f32.mrf.mxu0
    %v1248 = vadd.f32 0.0, %v1247
    %v1249 = vpop.f32.mrf.mxu0
    %v1250 = vpop.f32.mrf.mxu0
    %v1251 = vpop.f32.mrf.mxu0
    %1252 = vdwg.mxu0
    %v1253 = vmul.f32 %v582, %v366
    %v1254 = vmul.f32 %v804, %v366
    %v1255 = vmul.f32 %v1026, %v366
    %v1256 = vmul.f32 %v1248, %v366
    %v1257 = vld [vmem:[#allocation11] sm:$0xff]
    %v1258 = vld [vmem:[#allocation11 + $0x8] sm:$0xff]
    %v1259 = vld [vmem:[#allocation11 + $0x10] sm:$0xff]
    %v1260 = vld [vmem:[#allocation11 + $0x18] sm:$0xff]
    %v1261 = vld [vmem:[#allocation11 + $0x20] sm:$0xff]
    %v1262 = vld [vmem:[#allocation11 + $0x28] sm:$0xff]
    %v1263 = vld [vmem:[#allocation11 + $0x30] sm:$0xff]
    %v1264 = vld [vmem:[#allocation11 + $0x38] sm:$0xff]
    %v1265 = vld [vmem:[#allocation11 + $0x40] sm:$0xff]
    %v1266 = vld [vmem:[#allocation11 + $0x48] sm:$0xff]
    %v1267 = vld [vmem:[#allocation11 + $0x50] sm:$0xff]
    %v1268 = vld [vmem:[#allocation11 + $0x58] sm:$0xff]
    %v1269 = vld [vmem:[#allocation11 + $0x60] sm:$0xff]
    %v1270 = vld [vmem:[#allocation11 + $0x68] sm:$0xff]
    %v1271 = vld [vmem:[#allocation11 + $0x70] sm:$0xff]
    %v1272 = vld [vmem:[#allocation11 + $0x78] sm:$0xff]
    %v1273 = vld [vmem:[#allocation11 + $0x80] sm:$0xff]
    %v1274 = vld [vmem:[#allocation11 + $0x88] sm:$0xff]
    %v1275 = vld [vmem:[#allocation11 + $0x90] sm:$0xff]
    %v1276 = vld [vmem:[#allocation11 + $0x98] sm:$0xff]
    %v1277 = vld [vmem:[#allocation11 + $0xa0] sm:$0xff]
    %v1278 = vld [vmem:[#allocation11 + $0xa8] sm:$0xff]
    %v1279 = vld [vmem:[#allocation11 + $0xb0] sm:$0xff]
    %v1280 = vld [vmem:[#allocation11 + $0xb8] sm:$0xff]
    %v1281 = vld [vmem:[#allocation11 + $0xc0] sm:$0xff]
    %v1282 = vld [vmem:[#allocation11 + $0xc8] sm:$0xff]
    %v1283 = vld [vmem:[#allocation11 + $0xd0] sm:$0xff]
    %v1284 = vld [vmem:[#allocation11 + $0xd8] sm:$0xff]
    %v1285 = vld [vmem:[#allocation11 + $0xe0] sm:$0xff]
    %v1286 = vld [vmem:[#allocation11 + $0xe8] sm:$0xff]
    %v1287 = vld [vmem:[#allocation11 + $0xf0] sm:$0xff]
    %v1288 = vld [vmem:[#allocation11 + $0xf8] sm:$0xff]
    %v1289 = vld [vmem:[#allocation11 + $0x100] sm:$0xff]
    %v1290 = vld [vmem:[#allocation11 + $0x108] sm:$0xff]
    %v1291 = vld [vmem:[#allocation11 + $0x110] sm:$0xff]
    %v1292 = vld [vmem:[#allocation11 + $0x118] sm:$0xff]
    %v1293 = vld [vmem:[#allocation11 + $0x120] sm:$0xff]
    %v1294 = vld [vmem:[#allocation11 + $0x128] sm:$0xff]
    %v1295 = vld [vmem:[#allocation11 + $0x130] sm:$0xff]
    %v1296 = vld [vmem:[#allocation11 + $0x138] sm:$0xff]
    %v1297 = vld [vmem:[#allocation11 + $0x140] sm:$0xff]
    %v1298 = vld [vmem:[#allocation11 + $0x148] sm:$0xff]
    %v1299 = vld [vmem:[#allocation11 + $0x150] sm:$0xff]
    %v1300 = vld [vmem:[#allocation11 + $0x158] sm:$0xff]
    %v1301 = vld [vmem:[#allocation11 + $0x160] sm:$0xff]
    %v1302 = vld [vmem:[#allocation11 + $0x168] sm:$0xff]
    %v1303 = vld [vmem:[#allocation11 + $0x170] sm:$0xff]
    %v1304 = vld [vmem:[#allocation11 + $0x178] sm:$0xff]
    %v1305 = vld [vmem:[#allocation11 + $0x180] sm:$0xff]
    %v1306 = vld [vmem:[#allocation11 + $0x188] sm:$0xff]
    %v1307 = vld [vmem:[#allocation11 + $0x190] sm:$0xff]
    %v1308 = vld [vmem:[#allocation11 + $0x198] sm:$0xff]
    %v1309 = vld [vmem:[#allocation11 + $0x1a0] sm:$0xff]
    %v1310 = vld [vmem:[#allocation11 + $0x1a8] sm:$0xff]
    %v1311 = vld [vmem:[#allocation11 + $0x1b0] sm:$0xff]
    %v1312 = vld [vmem:[#allocation11 + $0x1b8] sm:$0xff]
    %v1313 = vld [vmem:[#allocation11 + $0x1c0] sm:$0xff]
    %v1314 = vld [vmem:[#allocation11 + $0x1c8] sm:$0xff]
    %v1315 = vld [vmem:[#allocation11 + $0x1d0] sm:$0xff]
    %v1316 = vld [vmem:[#allocation11 + $0x1d8] sm:$0xff]
    %v1317 = vld [vmem:[#allocation11 + $0x1e0] sm:$0xff]
    %v1318 = vld [vmem:[#allocation11 + $0x1e8] sm:$0xff]
    %v1319 = vld [vmem:[#allocation11 + $0x1f0] sm:$0xff]
    %v1320 = vld [vmem:[#allocation11 + $0x1f8] sm:$0xff]
    %v1321 = vld [vmem:[%s7] sm:$0x1]
    %v1323 = vlaneseq
    %v1324 = vshrl.u32 %v1323, 7
    %v1325 = vsub.s32 0, %v1324
    %v1326 = vrot.slane %v1321, %v1325
    %1328 = vmatprep.subr.mxu0 0.0
    %1329 = vmatpush1.msra.mxu0 %v1272
    %1330 = vmatprep.subr.mxu0 0.0
    %1331 = vmatpush1.msra.mxu0 %v1271
    %1332 = vmatprep.subr.mxu0 0.0
    %1333 = vmatpush1.msra.mxu0 %v1270
    %1334 = vmatprep.subr.mxu0 0.0
    %1335 = vmatpush1.msra.mxu0 %v1269
    %1336 = vmatprep.subr.mxu0 0.0
    %1337 = vmatpush1.msra.mxu0 %v1268
    %1338 = vmatprep.subr.mxu0 0.0
    %1339 = vmatpush1.msra.mxu0 %v1267
    %1340 = vmatprep.subr.mxu0 0.0
    %1341 = vmatpush1.msra.mxu0 %v1266
    %1342 = vmatprep.subr.mxu0 0.0
    %1343 = vmatpush1.msra.mxu0 %v1265
    %1344 = vmatprep.subr.mxu0 0.0
    %1345 = vmatpush1.msra.mxu0 %v1264
    %1346 = vmatprep.subr.mxu0 0.0
    %1347 = vmatpush1.msra.mxu0 %v1263
    %1348 = vmatprep.subr.mxu0 0.0
    %1349 = vmatpush1.msra.mxu0 %v1262
    %1350 = vmatprep.subr.mxu0 0.0
    %1351 = vmatpush1.msra.mxu0 %v1261
    %1352 = vmatprep.subr.mxu0 0.0
    %1353 = vmatpush1.msra.mxu0 %v1260
    %1354 = vmatprep.subr.mxu0 0.0
    %1355 = vmatpush1.msra.mxu0 %v1259
    %1356 = vmatprep.subr.mxu0 0.0
    %1357 = vmatpush1.msra.mxu0 %v1258
    %1358 = vmatprep.subr.mxu0 0.0
    %1359 = vmatpush1.msra.mxu0 %v1257
    %1360 = vmatprep.subr.mxu0 0.0
    %1361 = vmatpush2.msra.mxu0 %v1288
    %1362 = vmatprep.subr.mxu0 0.0
    %1363 = vmatpush2.msra.mxu0 %v1287
    %1364 = vmatprep.subr.mxu0 0.0
    %1365 = vmatpush2.msra.mxu0 %v1286
    %1366 = vmatprep.subr.mxu0 0.0
    %1367 = vmatpush2.msra.mxu0 %v1285
    %1368 = vmatprep.subr.mxu0 0.0
    %1369 = vmatpush2.msra.mxu0 %v1284
    %1370 = vmatprep.subr.mxu0 0.0
    %1371 = vmatpush2.msra.mxu0 %v1283
    %1372 = vmatprep.subr.mxu0 0.0
    %1373 = vmatpush2.msra.mxu0 %v1282
    %1374 = vmatprep.subr.mxu0 0.0
    %1375 = vmatpush2.msra.mxu0 %v1281
    %1376 = vmatprep.subr.mxu0 0.0
    %1377 = vmatpush2.msra.mxu0 %v1280
    %1378 = vmatprep.subr.mxu0 0.0
    %1379 = vmatpush2.msra.mxu0 %v1279
    %1380 = vmatprep.subr.mxu0 0.0
    %1381 = vmatpush2.msra.mxu0 %v1278
    %1382 = vmatprep.subr.mxu0 0.0
    %1383 = vmatpush2.msra.mxu0 %v1277
    %1384 = vmatprep.subr.mxu0 0.0
    %1385 = vmatpush2.msra.mxu0 %v1276
    %1386 = vmatprep.subr.mxu0 0.0
    %1387 = vmatpush2.msra.mxu0 %v1275
    %1388 = vmatprep.subr.mxu0 0.0
    %1389 = vmatpush2.msra.mxu0 %v1274
    %1390 = vmatprep.subr.mxu0 0.0
    %1391 = vmatpush2.msra.mxu0 %v1273
    %1392 = vmatprep.mubr.f32.mxu0 %v1254
    %1393 = vmatmul.mubr.f32.gmra.mxu0 %v1253
    %v1394 = vpop.f32.mrf.mxu0
    %v1395 = vadd.f32 %v1326, %v1394
    %v1396 = vpop.f32.mrf.mxu0
    %1397 = vdwg.mxu0
    %1398 = vmatprep.subr.mxu0 0.0
    %1399 = vmatpush1.msra.mxu0 %v1304
    %1400 = vmatprep.subr.mxu0 0.0
    %1401 = vmatpush1.msra.mxu0 %v1303
    %1402 = vmatprep.subr.mxu0 0.0
    %1403 = vmatpush1.msra.mxu0 %v1302
    %1404 = vmatprep.subr.mxu0 0.0
    %1405 = vmatpush1.msra.mxu0 %v1301
    %1406 = vmatprep.subr.mxu0 0.0
    %1407 = vmatpush1.msra.mxu0 %v1300
    %1408 = vmatprep.subr.mxu0 0.0
    %1409 = vmatpush1.msra.mxu0 %v1299
    %1410 = vmatprep.subr.mxu0 0.0
    %1411 = vmatpush1.msra.mxu0 %v1298
    %1412 = vmatprep.subr.mxu0 0.0
    %1413 = vmatpush1.msra.mxu0 %v1297
    %1414 = vmatprep.subr.mxu0 0.0
    %1415 = vmatpush1.msra.mxu0 %v1296
    %1416 = vmatprep.subr.mxu0 0.0
    %1417 = vmatpush1.msra.mxu0 %v1295
    %1418 = vmatprep.subr.mxu0 0.0
    %1419 = vmatpush1.msra.mxu0 %v1294
    %1420 = vmatprep.subr.mxu0 0.0
    %1421 = vmatpush1.msra.mxu0 %v1293
    %1422 = vmatprep.subr.mxu0 0.0
    %1423 = vmatpush1.msra.mxu0 %v1292
    %1424 = vmatprep.subr.mxu0 0.0
    %1425 = vmatpush1.msra.mxu0 %v1291
    %1426 = vmatprep.subr.mxu0 0.0
    %1427 = vmatpush1.msra.mxu0 %v1290
    %1428 = vmatprep.subr.mxu0 0.0
    %1429 = vmatpush1.msra.mxu0 %v1289
    %1430 = vmatprep.subr.mxu0 0.0
    %1431 = vmatpush2.msra.mxu0 %v1320
    %1432 = vmatprep.subr.mxu0 0.0
    %1433 = vmatpush2.msra.mxu0 %v1319
    %1434 = vmatprep.subr.mxu0 0.0
    %1435 = vmatpush2.msra.mxu0 %v1318
    %1436 = vmatprep.subr.mxu0 0.0
    %1437 = vmatpush2.msra.mxu0 %v1317
    %1438 = vmatprep.subr.mxu0 0.0
    %1439 = vmatpush2.msra.mxu0 %v1316
    %1440 = vmatprep.subr.mxu0 0.0
    %1441 = vmatpush2.msra.mxu0 %v1315
    %1442 = vmatprep.subr.mxu0 0.0
    %1443 = vmatpush2.msra.mxu0 %v1314
    %1444 = vmatprep.subr.mxu0 0.0
    %1445 = vmatpush2.msra.mxu0 %v1313
    %1446 = vmatprep.subr.mxu0 0.0
    %1447 = vmatpush2.msra.mxu0 %v1312
    %1448 = vmatprep.subr.mxu0 0.0
    %1449 = vmatpush2.msra.mxu0 %v1311
    %1450 = vmatprep.subr.mxu0 0.0
    %1451 = vmatpush2.msra.mxu0 %v1310
    %1452 = vmatprep.subr.mxu0 0.0
    %1453 = vmatpush2.msra.mxu0 %v1309
    %1454 = vmatprep.subr.mxu0 0.0
    %1455 = vmatpush2.msra.mxu0 %v1308
    %1456 = vmatprep.subr.mxu0 0.0
    %1457 = vmatpush2.msra.mxu0 %v1307
    %1458 = vmatprep.subr.mxu0 0.0
    %1459 = vmatpush2.msra.mxu0 %v1306
    %1460 = vmatprep.subr.mxu0 0.0
    %1461 = vmatpush2.msra.mxu0 %v1305
    %1462 = vmatprep.mubr.f32.mxu0 %v1256
    %1463 = vmatmul.mubr.f32.gmra.mxu0 %v1255
    %v1464 = vpop.f32.mrf.mxu0
    %v1465 = vadd.f32 %v1395, %v1464
    %v1466 = vpop.f32.mrf.mxu0
    %1467 = vdwg.mxu0
    %v1468 = vadd.f32 %v1465, %v121
    %v1469 = vld [vmem:[%s10] sm:$0x1]
    %v1471 = vlaneseq
    %v1472 = vshrl.u32 %v1471, 7
    %v1473 = vsub.s32 0, %v1472
    %v1474 = vrot.slane %v1469, %v1473
    %v1476 = vsub.f32 %v1468, %v1474
    %v1477 = vld [vmem:[%s11] sm:$0x1]
    %v1478 = vadd.f32 %v1477, 0.001
    %v1479 = vrsqrt.pop %v1478
    %v1481 = vlaneseq
    %v1482 = vshrl.u32 %v1481, 7
    %v1483 = vsub.s32 0, %v1482
    %v1484 = vrot.slane %v1479, %v1483
    %v1486 = vmul.f32 %v1476, %v1484
    %v1487 = vld [vmem:[%s8] sm:$0x1]
    %v1489 = vlaneseq
    %v1490 = vshrl.u32 %v1489, 7
    %v1491 = vsub.s32 0, %v1490
    %v1492 = vrot.slane %v1487, %v1491
    %v1494 = vmul.f32 %v1486, %v1492
    %v1495 = vld [vmem:[%s9] sm:$0x1]
    %v1497 = vlaneseq
    %v1498 = vshrl.u32 %v1497, 7
    %v1499 = vsub.s32 0, %v1498
    %v1500 = vrot.slane %v1495, %v1499
    %v1502 = vadd.f32 %v1494, %v1500
    %1503 = vst [vmem:[#allocation13] sm:$0xff] %v1502
    // Predicated region
    $region74: #{tpu_custom_call.1} parent=1 // pred_check
      _
    $region75: #{tpu_custom_call.1} parent=1 // pred_check_branch
      %1505 = sbr.rel (0) target = $region77
    $region76: #{tpu_custom_call.1} parent=1 // pred_region
      %s1507 = ssub.s32 128, 128
      %1508 = vsyncadd [#allocation4], %s1507
      %s1510 = sshll.u32 [#allocation13], 4
      %s1511 = int_to_ptr.vmem [resolvable:$true] %s1510
      %1513 = dma.vmem_to_hbm [thread:$0]  %s1511, 128, %s12, [#allocation4]
    $region77: #{tpu_custom_call.1} parent=1 // pred_fallthru
      _
    // Predicated region
    $region78: #{tpu_custom_call.1} parent=1 // pred_check
      _
    $region79: #{tpu_custom_call.1} parent=1 // pred_check_branch
      %1515 = sbr.rel (0) target = $region81
    $region80: #{tpu_custom_call.1} parent=1 // pred_region
      %1516 = dma.done [#allocation4], 128
    $region81: #{tpu_custom_call.1} parent=1 // pred_fallthru
      _
    %1517 = vsyncpa [#allocation3], 1
    %1518 = vsyncpa [#allocation6], 1
    %1519 = vsyncpa [#allocation9], 1
    %1520 = vsyncpa [#allocation12], 1
    %1521 = vsyncpa [#allocation4], 1

</llo_original>
